<compile_context>
chip_gen: v5e
topology: v5e:2x2
jax: 0.10.0
libtpu: 0.0.40
codegen_flags: <defaults>
</compile_context>

<pallas_src>
import functools
import math

import jax
import jax.numpy as jnp
from jax import lax
from jax.experimental import pallas as pl
from jax.experimental.pallas import tpu as pltpu


def _layer_norm(v, gamma, beta, eps=1e-6):
    # eps=1e-6 matches nn.LayerNorm(normalized_shape=d_model, eps=1e-06).
    mu = jnp.mean(v, axis=-1, keepdims=True)
    var = jnp.mean((v - mu) ** 2, axis=-1, keepdims=True)
    return (v - mu) * lax.rsqrt(var + eps) * gamma + beta


def encoder_layer_kernel(
    x_ref, mask_ref,
    ln_g_ref, ln_b_ref,
    wqkv_ref, bqkv_ref, wo_ref, bo_ref,
    out_ref,
    *, head_count,
):
    x = x_ref[0]                       # (T, D) f32 for this batch element
    T, D = x.shape
    dk = D // head_count

    # Additive mask bias (0 keep / -1e9 masked), broadcast to (T, T) ONCE.
    mask_bias = jnp.broadcast_to((mask_ref[0] - 1.0) * 1e9, (T, T))

    # --- pre-norm -> fused QKV projection (bf16 MXU, f32 accumulation) ---
    xn = _layer_norm(x, ln_g_ref[...], ln_b_ref[...])
    qkv = jnp.dot(xn.astype(jnp.bfloat16), wqkv_ref[...],
                  preferred_element_type=jnp.float32) + bqkv_ref[...]   # (T, 3D)
    # Single f32->bf16 pack; 1/sqrt(dk) already folded into the Q columns
    # of wqkv/bqkv wrapper-side, so no per-tile scale multiply here.
    qkv = qkv.astype(jnp.bfloat16)
    q = qkv[:, 0 * D:1 * D]
    k = qkv[:, 1 * D:2 * D]
    v = qkv[:, 2 * D:3 * D]

    # Per-head attention.  Contexts are concatenated and pushed through ONE
    # full-depth (K=D) output projection instead of H separate K=dk folds.
    # TODO(synk): at BERT scale (H=12, T>=256) replace this static unroll with a
    # head-major (H, T, dk) lax.fori_loop + flash-style (tq, tk) online softmax.
    ctx_heads = []
    for h in range(head_count):                               # static unroll
        sl = slice(h * dk, (h + 1) * dk)
        s = lax.dot_general(q[:, sl], k[:, sl],               # q_h @ k_h^T
                            (((1,), (1,)), ((), ())),
                            preferred_element_type=jnp.float32)          # (T, T)
        s = s + mask_bias
        s = s - jnp.max(s, axis=-1, keepdims=True)            # stable softmax
        p = jnp.exp(s)
        p = p * pl.reciprocal(jnp.sum(p, axis=-1, keepdims=True), approx=True)
        # attention dropout is identity in inference mode
        ctx_heads.append(jnp.dot(p.astype(jnp.bfloat16), v[:, sl],
                                 preferred_element_type=jnp.float32))    # (T, dk)
    ctx = jnp.concatenate(ctx_heads, axis=-1).astype(jnp.bfloat16)       # (T, D)
    attn = jnp.dot(ctx, wo_ref[...],
                   preferred_element_type=jnp.float32) + bo_ref[...]

    # F.dropout(context) is identity in inference mode.
    x_res = x + attn
    # Reference bug reproduced: output = F.dropout(x) + x  ->  2 * x_res (eval).
    # The feed-forward result is never used, so it is not computed at all.
    out_ref[0] = x_res + x_res


def transformer_encoder_layer(x, mask, params, head_count):
    B, T, D = x.shape
    dk = D // head_count
    scale = 1.0 / math.sqrt(dk)
    bf16 = jnp.bfloat16

    # Fuse Q/K/V weights/biases wrapper-side; fold 1/sqrt(dk) into the Q
    # columns in the same pass; cast matmul weights to bf16.
    wqkv = jnp.concatenate(
        [params["wq"] * scale, params["wk"], params["wv"]], axis=1).astype(bf16)
    bqkv = jnp.concatenate(
        [params["bq"] * scale, params["bk"], params["bv"]], axis=1)
    wo = params["wo"].astype(bf16)

    args = (x, mask,
            params["ln1_g"], params["ln1_b"],
            wqkv, bqkv, wo, params["bo"])

    kernel = functools.partial(encoder_layer_kernel, head_count=head_count)

    def run(single_buffer_weights):
        def weight_spec(shape):
            nd = len(shape)
            idx = lambda b, _nd=nd: (0,) * _nd          # grid-invariant block
            if single_buffer_weights:
                # Never re-fetched across the batch grid -> no double buffering
                # (halves weight VMEM; important on v7x's 64 MiB VMEM at BERT size).
                return pl.BlockSpec(shape, idx, pipeline_mode=pl.Buffered(1))
            return pl.BlockSpec(shape, idx)

        in_specs = [
            pl.BlockSpec((1, T, D), lambda b: (b, 0, 0)),     # x
            pl.BlockSpec((1, 1, T), lambda b: (b, 0, 0)),     # mask
            weight_spec((1, D)), weight_spec((1, D)),         # ln_attn gamma/beta
            weight_spec((D, 3 * D)), weight_spec((1, 3 * D)), # fused W_qkv, b_qkv
            weight_spec((D, D)), weight_spec((1, D)),         # Wo, bo
        ]
        out_specs = pl.BlockSpec((1, T, D), lambda b: (b, 0, 0))

        return pl.pallas_call(
            kernel,
            grid=(B,),
            in_specs=in_specs,
            out_specs=out_specs,
            out_shape=jax.ShapeDtypeStruct((B, T, D), jnp.float32),
            compiler_params=pltpu.CompilerParams(
                # Batch axis is independent -> megacore sharding on v7x.
                # TODO(synk): add a "parallel" q-tile axis for BERT-size T so
                # both v7x TensorCores stay busy when B is small/odd.
                dimension_semantics=("parallel",),
                # 32 MiB: v6e scoped default, raises v5e's 16 MiB default, and
                # (no FFN + single-buffered weights) fits v7x's 64 MiB physical.
                vmem_limit_bytes=32 * 1024 * 1024,
            ),
        )(*args)

    try:
        out = run(single_buffer_weights=True)
        jax.block_until_ready(out)
        return out
    except Exception:
        # TODO(synk): this jax build rejected pl.Buffered(1); fall back to the
        # default double-buffering of the grid-invariant weights (correctness
        # identical, only VMEM footprint differs).
        return run(single_buffer_weights=False)


def reference_forward(x, mask, params, head_count):
    """Pure-JAX f32 reference with the same (buggy) module semantics."""
    def ln(v, g, b, eps=1e-6):
        mu = jnp.mean(v, axis=-1, keepdims=True)
        var = jnp.mean((v - mu) ** 2, axis=-1, keepdims=True)
        return (v - mu) / jnp.sqrt(var + eps) * g + b

    B, T, D = x.shape
    dk = D // head_count

    def split_heads(t):
        return t.reshape(B, T, head_count, dk).transpose(0, 2, 1, 3)

    xn = ln(x, params["ln1_g"], params["ln1_b"])
    q = split_heads(xn @ params["wq"] + params["bq"])
    k = split_heads(xn @ params["wk"] + params["bk"])
    v = split_heads(xn @ params["wv"] + params["bv"])
    s = jnp.einsum("bhqd,bhkd->bhqk", q, k) / math.sqrt(dk)
    s = jnp.where(mask[:, None, :, :] == 0.0, -1e9, s)
    p = jax.nn.softmax(s, axis=-1)
    ctx = jnp.einsum("bhqk,bhkd->bhqd", p, v).transpose(0, 2, 1, 3).reshape(B, T, D)
    attn = ctx @ params["wo"] + params["bo"]
    x_res = x + attn
    # feed-forward output is discarded by the reference forward
    return x_res + x_res


def init_params(key, d_model, d_ff):
    ks = jax.random.split(key, 6)

    def lin(k, fan_in, fan_out):
        kw, kb = jax.random.split(k)
        w = jax.random.normal(kw, (fan_in, fan_out), jnp.float32) / math.sqrt(fan_in)
        b = 0.01 * jax.random.normal(kb, (1, fan_out), jnp.float32)
        return w, b

    wq, bq = lin(ks[0], d_model, d_model)
    wk, bk = lin(ks[1], d_model, d_model)
    wv, bv = lin(ks[2], d_model, d_model)
    wo, bo = lin(ks[3], d_model, d_model)
    # FFN / layer_norm_ff params exist on the module but never affect the
    # forward output (reference discards the FFN result); kept here only to
    # mirror the module's parameter set -- not passed to the kernel.
    wf1, bf1 = lin(ks[4], d_model, d_ff)
    wf2, bf2 = lin(ks[5], d_ff, d_model)
    return {
        "ln1_g": jnp.ones((1, d_model), jnp.float32),
        "ln1_b": jnp.zeros((1, d_model), jnp.float32),
        "wq": wq, "bq": bq, "wk": wk, "bk": bk, "wv": wv, "bv": bv,
        "wo": wo, "bo": bo,
        "ln2_g": jnp.ones((1, d_model), jnp.float32),
        "ln2_b": jnp.zeros((1, d_model), jnp.float32),
        "wf1": wf1, "bf1": bf1, "wf2": wf2, "bf2": bf2,
    }


if __name__ == "__main__":
    B, T, d_model, head_count, d_ff = 2, 8, 32, 4, 64
    # dropout = 0.1 in the module; inference mode -> identity.

    key = jax.random.PRNGKey(0)
    kx, kp = jax.random.split(key)
    x = jax.random.normal(kx, (B, T, d_model), jnp.float32)
    mask = jnp.ones((B, 1, T), jnp.float32).at[:, :, -2:].set(0.0)  # mask last 2 keys
    params = init_params(kp, d_model, d_ff)

    out = transformer_encoder_layer(x, mask, params, head_count)
    jax.block_until_ready(out)
    assert out.shape == (B, T, d_model)

    ref = reference_forward(x, mask, params, head_count)
    err = float(jnp.max(jnp.abs(out - ref)))
    assert err < 0.2, f"numerical mismatch vs reference: {err}"
    print("KERNEL_OK")
</pallas_src>

<mosaic_0001>
module attributes {stable_mosaic.version = 11 : i64} {
  func.func @encoder_layer_kernel(%arg0: i32, %arg1: memref<1x8x32xf32, #tpu.memory_space<vmem>>, %arg2: memref<1x1x8xf32, #tpu.memory_space<vmem>>, %arg3: memref<1x32xf32, #tpu.memory_space<vmem>>, %arg4: memref<1x32xf32, #tpu.memory_space<vmem>>, %arg5: memref<32x96xbf16, #tpu.memory_space<vmem>>, %arg6: memref<1x96xf32, #tpu.memory_space<vmem>>, %arg7: memref<32x32xbf16, #tpu.memory_space<vmem>>, %arg8: memref<1x32xf32, #tpu.memory_space<vmem>>, %arg9: memref<1x8x32xf32, #tpu.memory_space<vmem>>) attributes {dimension_semantics = [#tpu.dimension_semantics<parallel>], iteration_bounds = array<i64: 2>, scalar_prefetch = 0 : i64, scratch_operands = 0 : i64, tpu.core_type = #tpu.core_type<tc>, window_params = [{transform_indices = @transform_0, window_bounds = array<i64: 1, 8, 32>}, {transform_indices = @transform_1, window_bounds = array<i64: 1, 1, 8>}, {pipeline_mode = #tpu.pipeline_mode<synchronous>, transform_indices = @transform_2, window_bounds = array<i64: 1, 32>}, {pipeline_mode = #tpu.pipeline_mode<synchronous>, transform_indices = @transform_3, window_bounds = array<i64: 1, 32>}, {pipeline_mode = #tpu.pipeline_mode<synchronous>, transform_indices = @transform_4, window_bounds = array<i64: 32, 96>}, {pipeline_mode = #tpu.pipeline_mode<synchronous>, transform_indices = @transform_5, window_bounds = array<i64: 1, 96>}, {pipeline_mode = #tpu.pipeline_mode<synchronous>, transform_indices = @transform_6, window_bounds = array<i64: 32, 32>}, {pipeline_mode = #tpu.pipeline_mode<synchronous>, transform_indices = @transform_7, window_bounds = array<i64: 1, 32>}, {transform_indices = @transform_8, window_bounds = array<i64: 1, 8, 32>}]} {
    %c0 = arith.constant 0 : index
    %c0_0 = arith.constant 0 : index
    %c0_1 = arith.constant 0 : index
    %0 = vector.load %arg1[%c0, %c0_0, %c0_1] : memref<1x8x32xf32, #tpu.memory_space<vmem>>, vector<1x8x32xf32>
    %1 = vector.shape_cast %0 : vector<1x8x32xf32> to vector<8x32xf32>
    %c0_2 = arith.constant 0 : index
    %c0_3 = arith.constant 0 : index
    %c0_4 = arith.constant 0 : index
    %2 = vector.load %arg2[%c0_2, %c0_3, %c0_4] : memref<1x1x8xf32, #tpu.memory_space<vmem>>, vector<1x1x8xf32>
    %3 = vector.shape_cast %2 : vector<1x1x8xf32> to vector<1x8xf32>
    %cst = arith.constant 1.000000e+00 : f32
    %4 = vector.broadcast %cst : f32 to vector<1x8xf32>
    %5 = arith.subf %3, %4 : vector<1x8xf32>
    %cst_5 = arith.constant 1.000000e+09 : f32
    %6 = vector.broadcast %cst_5 : f32 to vector<1x8xf32>
    %7 = arith.mulf %5, %6 : vector<1x8xf32>
    %8 = vector.shape_cast %7 : vector<1x8xf32> to vector<1x8xf32>
    %9 = vector.broadcast %8 : vector<1x8xf32> to vector<8x8xf32>
    %c0_6 = arith.constant 0 : index
    %c0_7 = arith.constant 0 : index
    %10 = vector.load %arg3[%c0_6, %c0_7] : memref<1x32xf32, #tpu.memory_space<vmem>>, vector<1x32xf32>
    %c0_8 = arith.constant 0 : index
    %c0_9 = arith.constant 0 : index
    %11 = vector.load %arg4[%c0_8, %c0_9] : memref<1x32xf32, #tpu.memory_space<vmem>>, vector<1x32xf32>
    %cst_10 = arith.constant dense<0.000000e+00> : vector<8xf32>
    %12 = vector.multi_reduction <add>, %1, %cst_10 [1] : vector<8x32xf32> to vector<8xf32>
    %13 = vector.shape_cast %12 : vector<8xf32> to vector<8x1xf32>
    %cst_11 = arith.constant 3.200000e+01 : f32
    %14 = vector.broadcast %cst_11 : f32 to vector<8x1xf32>
    %15 = arith.divf %13, %14 : vector<8x1xf32>
    %16 = vector.broadcast %15 : vector<8x1xf32> to vector<8x32xf32>
    %17 = arith.subf %1, %16 : vector<8x32xf32>
    %18 = arith.mulf %17, %17 : vector<8x32xf32>
    %cst_12 = arith.constant dense<0.000000e+00> : vector<8xf32>
    %19 = vector.multi_reduction <add>, %18, %cst_12 [1] : vector<8x32xf32> to vector<8xf32>
    %20 = vector.shape_cast %19 : vector<8xf32> to vector<8x1xf32>
    %cst_13 = arith.constant 3.200000e+01 : f32
    %21 = vector.broadcast %cst_13 : f32 to vector<8x1xf32>
    %22 = arith.divf %20, %21 : vector<8x1xf32>
    %23 = vector.broadcast %15 : vector<8x1xf32> to vector<8x32xf32>
    %24 = arith.subf %1, %23 : vector<8x32xf32>
    %cst_14 = arith.constant 9.99999997E-7 : f32
    %25 = vector.broadcast %cst_14 : f32 to vector<8x1xf32>
    %26 = arith.addf %22, %25 : vector<8x1xf32>
    %27 = math.rsqrt %26 : vector<8x1xf32>
    %28 = vector.broadcast %27 : vector<8x1xf32> to vector<8x32xf32>
    %29 = arith.mulf %24, %28 : vector<8x32xf32>
    %30 = vector.broadcast %10 : vector<1x32xf32> to vector<8x32xf32>
    %31 = arith.mulf %29, %30 : vector<8x32xf32>
    %32 = vector.broadcast %11 : vector<1x32xf32> to vector<8x32xf32>
    %33 = arith.addf %31, %32 : vector<8x32xf32>
    %34 = arith.truncf %33 : vector<8x32xf32> to vector<8x32xbf16>
    %c0_15 = arith.constant 0 : index
    %c0_16 = arith.constant 0 : index
    %35 = vector.load %arg5[%c0_15, %c0_16] : memref<32x96xbf16, #tpu.memory_space<vmem>>, vector<32x96xbf16>
    %cst_17 = arith.constant dense<0.000000e+00> : vector<8x96xf32>
    %36 = tpu.matmul %34, %35, %cst_17 {dimension_numbers = #tpu.dot_dimension_numbers<[1], [0], [0], [1], [0, 0, 1, 1], [], []>} : vector<8x32xbf16>, vector<32x96xbf16>, vector<8x96xf32> -> vector<8x96xf32>
    %c0_18 = arith.constant 0 : index
    %c0_19 = arith.constant 0 : index
    %37 = vector.load %arg6[%c0_18, %c0_19] : memref<1x96xf32, #tpu.memory_space<vmem>>, vector<1x96xf32>
    %38 = vector.broadcast %37 : vector<1x96xf32> to vector<8x96xf32>
    %39 = arith.addf %36, %38 : vector<8x96xf32>
    %40 = arith.truncf %39 : vector<8x96xf32> to vector<8x96xbf16>
    %41 = vector.extract_strided_slice %40 {offsets = [0, 0], sizes = [8, 32], strides = [1, 1]} : vector<8x96xbf16> to vector<8x32xbf16>
    %42 = vector.extract_strided_slice %40 {offsets = [0, 32], sizes = [8, 32], strides = [1, 1]} : vector<8x96xbf16> to vector<8x32xbf16>
    %43 = vector.extract_strided_slice %40 {offsets = [0, 64], sizes = [8, 32], strides = [1, 1]} : vector<8x96xbf16> to vector<8x32xbf16>
    %44 = vector.extract_strided_slice %41 {offsets = [0, 0], sizes = [8, 8], strides = [1, 1]} : vector<8x32xbf16> to vector<8x8xbf16>
    %45 = vector.extract_strided_slice %42 {offsets = [0, 0], sizes = [8, 8], strides = [1, 1]} : vector<8x32xbf16> to vector<8x8xbf16>
    %cst_20 = arith.constant dense<0.000000e+00> : vector<8x8xf32>
    %46 = tpu.matmul %44, %45, %cst_20 {dimension_numbers = #tpu.dot_dimension_numbers<[1], [1], [0], [0], [0, 0, 1, 0], [], []>} : vector<8x8xbf16>, vector<8x8xbf16>, vector<8x8xf32> -> vector<8x8xf32>
    %47 = arith.addf %46, %9 : vector<8x8xf32>
    %cst_21 = arith.constant dense<0xFF800000> : vector<8xf32>
    %48 = vector.multi_reduction <maximumf>, %47, %cst_21 [1] : vector<8x8xf32> to vector<8xf32>
    %49 = vector.shape_cast %48 : vector<8xf32> to vector<8x1xf32>
    %50 = vector.broadcast %49 : vector<8x1xf32> to vector<8x8xf32>
    %51 = arith.subf %47, %50 : vector<8x8xf32>
    %52 = math.exp %51 : vector<8x8xf32>
    %cst_22 = arith.constant dense<0.000000e+00> : vector<8xf32>
    %53 = vector.multi_reduction <add>, %52, %cst_22 [1] : vector<8x8xf32> to vector<8xf32>
    %54 = vector.shape_cast %53 : vector<8xf32> to vector<8x1xf32>
    %55 = tpu.reciprocal %54 {approx = true} : vector<8x1xf32> -> vector<8x1xf32>
    %56 = vector.broadcast %55 : vector<8x1xf32> to vector<8x8xf32>
    %57 = arith.mulf %52, %56 : vector<8x8xf32>
    %58 = arith.truncf %57 : vector<8x8xf32> to vector<8x8xbf16>
    %59 = vector.extract_strided_slice %43 {offsets = [0, 0], sizes = [8, 8], strides = [1, 1]} : vector<8x32xbf16> to vector<8x8xbf16>
    %cst_23 = arith.constant dense<0.000000e+00> : vector<8x8xf32>
    %60 = tpu.matmul %58, %59, %cst_23 {dimension_numbers = #tpu.dot_dimension_numbers<[1], [0], [0], [1], [0, 0, 1, 1], [], []>} : vector<8x8xbf16>, vector<8x8xbf16>, vector<8x8xf32> -> vector<8x8xf32>
    %61 = vector.extract_strided_slice %41 {offsets = [0, 8], sizes = [8, 8], strides = [1, 1]} : vector<8x32xbf16> to vector<8x8xbf16>
    %62 = vector.extract_strided_slice %42 {offsets = [0, 8], sizes = [8, 8], strides = [1, 1]} : vector<8x32xbf16> to vector<8x8xbf16>
    %cst_24 = arith.constant dense<0.000000e+00> : vector<8x8xf32>
    %63 = tpu.matmul %61, %62, %cst_24 {dimension_numbers = #tpu.dot_dimension_numbers<[1], [1], [0], [0], [0, 0, 1, 0], [], []>} : vector<8x8xbf16>, vector<8x8xbf16>, vector<8x8xf32> -> vector<8x8xf32>
    %64 = arith.addf %63, %9 : vector<8x8xf32>
    %cst_25 = arith.constant dense<0xFF800000> : vector<8xf32>
    %65 = vector.multi_reduction <maximumf>, %64, %cst_25 [1] : vector<8x8xf32> to vector<8xf32>
    %66 = vector.shape_cast %65 : vector<8xf32> to vector<8x1xf32>
    %67 = vector.broadcast %66 : vector<8x1xf32> to vector<8x8xf32>
    %68 = arith.subf %64, %67 : vector<8x8xf32>
    %69 = math.exp %68 : vector<8x8xf32>
    %cst_26 = arith.constant dense<0.000000e+00> : vector<8xf32>
    %70 = vector.multi_reduction <add>, %69, %cst_26 [1] : vector<8x8xf32> to vector<8xf32>
    %71 = vector.shape_cast %70 : vector<8xf32> to vector<8x1xf32>
    %72 = tpu.reciprocal %71 {approx = true} : vector<8x1xf32> -> vector<8x1xf32>
    %73 = vector.broadcast %72 : vector<8x1xf32> to vector<8x8xf32>
    %74 = arith.mulf %69, %73 : vector<8x8xf32>
    %75 = arith.truncf %74 : vector<8x8xf32> to vector<8x8xbf16>
    %76 = vector.extract_strided_slice %43 {offsets = [0, 8], sizes = [8, 8], strides = [1, 1]} : vector<8x32xbf16> to vector<8x8xbf16>
    %cst_27 = arith.constant dense<0.000000e+00> : vector<8x8xf32>
    %77 = tpu.matmul %75, %76, %cst_27 {dimension_numbers = #tpu.dot_dimension_numbers<[1], [0], [0], [1], [0, 0, 1, 1], [], []>} : vector<8x8xbf16>, vector<8x8xbf16>, vector<8x8xf32> -> vector<8x8xf32>
    %78 = vector.extract_strided_slice %41 {offsets = [0, 16], sizes = [8, 8], strides = [1, 1]} : vector<8x32xbf16> to vector<8x8xbf16>
    %79 = vector.extract_strided_slice %42 {offsets = [0, 16], sizes = [8, 8], strides = [1, 1]} : vector<8x32xbf16> to vector<8x8xbf16>
    %cst_28 = arith.constant dense<0.000000e+00> : vector<8x8xf32>
    %80 = tpu.matmul %78, %79, %cst_28 {dimension_numbers = #tpu.dot_dimension_numbers<[1], [1], [0], [0], [0, 0, 1, 0], [], []>} : vector<8x8xbf16>, vector<8x8xbf16>, vector<8x8xf32> -> vector<8x8xf32>
    %81 = arith.addf %80, %9 : vector<8x8xf32>
    %cst_29 = arith.constant dense<0xFF800000> : vector<8xf32>
    %82 = vector.multi_reduction <maximumf>, %81, %cst_29 [1] : vector<8x8xf32> to vector<8xf32>
    %83 = vector.shape_cast %82 : vector<8xf32> to vector<8x1xf32>
    %84 = vector.broadcast %83 : vector<8x1xf32> to vector<8x8xf32>
    %85 = arith.subf %81, %84 : vector<8x8xf32>
    %86 = math.exp %85 : vector<8x8xf32>
    %cst_30 = arith.constant dense<0.000000e+00> : vector<8xf32>
    %87 = vector.multi_reduction <add>, %86, %cst_30 [1] : vector<8x8xf32> to vector<8xf32>
    %88 = vector.shape_cast %87 : vector<8xf32> to vector<8x1xf32>
    %89 = tpu.reciprocal %88 {approx = true} : vector<8x1xf32> -> vector<8x1xf32>
    %90 = vector.broadcast %89 : vector<8x1xf32> to vector<8x8xf32>
    %91 = arith.mulf %86, %90 : vector<8x8xf32>
    %92 = arith.truncf %91 : vector<8x8xf32> to vector<8x8xbf16>
    %93 = vector.extract_strided_slice %43 {offsets = [0, 16], sizes = [8, 8], strides = [1, 1]} : vector<8x32xbf16> to vector<8x8xbf16>
    %cst_31 = arith.constant dense<0.000000e+00> : vector<8x8xf32>
    %94 = tpu.matmul %92, %93, %cst_31 {dimension_numbers = #tpu.dot_dimension_numbers<[1], [0], [0], [1], [0, 0, 1, 1], [], []>} : vector<8x8xbf16>, vector<8x8xbf16>, vector<8x8xf32> -> vector<8x8xf32>
    %95 = vector.extract_strided_slice %41 {offsets = [0, 24], sizes = [8, 8], strides = [1, 1]} : vector<8x32xbf16> to vector<8x8xbf16>
    %96 = vector.extract_strided_slice %42 {offsets = [0, 24], sizes = [8, 8], strides = [1, 1]} : vector<8x32xbf16> to vector<8x8xbf16>
    %cst_32 = arith.constant dense<0.000000e+00> : vector<8x8xf32>
    %97 = tpu.matmul %95, %96, %cst_32 {dimension_numbers = #tpu.dot_dimension_numbers<[1], [1], [0], [0], [0, 0, 1, 0], [], []>} : vector<8x8xbf16>, vector<8x8xbf16>, vector<8x8xf32> -> vector<8x8xf32>
    %98 = arith.addf %97, %9 : vector<8x8xf32>
    %cst_33 = arith.constant dense<0xFF800000> : vector<8xf32>
    %99 = vector.multi_reduction <maximumf>, %98, %cst_33 [1] : vector<8x8xf32> to vector<8xf32>
    %100 = vector.shape_cast %99 : vector<8xf32> to vector<8x1xf32>
    %101 = vector.broadcast %100 : vector<8x1xf32> to vector<8x8xf32>
    %102 = arith.subf %98, %101 : vector<8x8xf32>
    %103 = math.exp %102 : vector<8x8xf32>
    %cst_34 = arith.constant dense<0.000000e+00> : vector<8xf32>
    %104 = vector.multi_reduction <add>, %103, %cst_34 [1] : vector<8x8xf32> to vector<8xf32>
    %105 = vector.shape_cast %104 : vector<8xf32> to vector<8x1xf32>
    %106 = tpu.reciprocal %105 {approx = true} : vector<8x1xf32> -> vector<8x1xf32>
    %107 = vector.broadcast %106 : vector<8x1xf32> to vector<8x8xf32>
    %108 = arith.mulf %103, %107 : vector<8x8xf32>
    %109 = arith.truncf %108 : vector<8x8xf32> to vector<8x8xbf16>
    %110 = vector.extract_strided_slice %43 {offsets = [0, 24], sizes = [8, 8], strides = [1, 1]} : vector<8x32xbf16> to vector<8x8xbf16>
    %cst_35 = arith.constant dense<0.000000e+00> : vector<8x8xf32>
    %111 = tpu.matmul %109, %110, %cst_35 {dimension_numbers = #tpu.dot_dimension_numbers<[1], [0], [0], [1], [0, 0, 1, 1], [], []>} : vector<8x8xbf16>, vector<8x8xbf16>, vector<8x8xf32> -> vector<8x8xf32>
    %112 = tpu.concatenate %60, %77, %94, %111 in 1 : vector<8x8xf32>, vector<8x8xf32>, vector<8x8xf32>, vector<8x8xf32> -> vector<8x32xf32>
    %113 = arith.truncf %112 : vector<8x32xf32> to vector<8x32xbf16>
    %c0_36 = arith.constant 0 : index
    %c0_37 = arith.constant 0 : index
    %114 = vector.load %arg7[%c0_36, %c0_37] : memref<32x32xbf16, #tpu.memory_space<vmem>>, vector<32x32xbf16>
    %cst_38 = arith.constant dense<0.000000e+00> : vector<8x32xf32>
    %115 = tpu.matmul %113, %114, %cst_38 {dimension_numbers = #tpu.dot_dimension_numbers<[1], [0], [0], [1], [0, 0, 1, 1], [], []>} : vector<8x32xbf16>, vector<32x32xbf16>, vector<8x32xf32> -> vector<8x32xf32>
    %c0_39 = arith.constant 0 : index
    %c0_40 = arith.constant 0 : index
    %116 = vector.load %arg8[%c0_39, %c0_40] : memref<1x32xf32, #tpu.memory_space<vmem>>, vector<1x32xf32>
    %117 = vector.broadcast %116 : vector<1x32xf32> to vector<8x32xf32>
    %118 = arith.addf %115, %117 : vector<8x32xf32>
    %119 = arith.addf %1, %118 : vector<8x32xf32>
    %120 = arith.addf %119, %119 : vector<8x32xf32>
    %c0_41 = arith.constant 0 : index
    %c0_42 = arith.constant 0 : index
    %c0_43 = arith.constant 0 : index
    %121 = vector.load %arg9[%c0_41, %c0_42, %c0_43] : memref<1x8x32xf32, #tpu.memory_space<vmem>>, vector<1x8x32xf32>
    %122 = vector.shape_cast %121 : vector<1x8x32xf32> to vector<8x32xf32>
    %123 = vector.shape_cast %120 : vector<8x32xf32> to vector<1x8x32xf32>
    tpu.vector_store %arg9[%c0_41, %c0_42, %c0_43], %123 {strides = array<i32>} : memref<1x8x32xf32, #tpu.memory_space<vmem>>, vector<1x8x32xf32>,
    return
  }
  func.func @transform_0(%arg0: i32) -> (i32, i32, i32) {
    %c0_i32 = arith.constant 0 : i32
    %c0_i32_0 = arith.constant 0 : i32
    %c0_i32_1 = arith.constant 0 : i32
    return %arg0, %c0_i32, %c0_i32_0 : i32, i32, i32
  }
  func.func @transform_1(%arg0: i32) -> (i32, i32, i32) {
    %c0_i32 = arith.constant 0 : i32
    %c0_i32_0 = arith.constant 0 : i32
    %c0_i32_1 = arith.constant 0 : i32
    return %arg0, %c0_i32, %c0_i32_0 : i32, i32, i32
  }
  func.func @transform_2(%arg0: i32) -> (i32, i32) {
    %c0_i32 = arith.constant 0 : i32
    %c0_i32_0 = arith.constant 0 : i32
    %c0_i32_1 = arith.constant 0 : i32
    return %c0_i32, %c0_i32_0 : i32, i32
  }
  func.func @transform_3(%arg0: i32) -> (i32, i32) {
    %c0_i32 = arith.constant 0 : i32
    %c0_i32_0 = arith.constant 0 : i32
    %c0_i32_1 = arith.constant 0 : i32
    return %c0_i32, %c0_i32_0 : i32, i32
  }
  func.func @transform_4(%arg0: i32) -> (i32, i32) {
    %c0_i32 = arith.constant 0 : i32
    %c0_i32_0 = arith.constant 0 : i32
    %c0_i32_1 = arith.constant 0 : i32
    return %c0_i32, %c0_i32_0 : i32, i32
  }
  func.func @transform_5(%arg0: i32) -> (i32, i32) {
    %c0_i32 = arith.constant 0 : i32
    %c0_i32_0 = arith.constant 0 : i32
    %c0_i32_1 = arith.constant 0 : i32
    return %c0_i32, %c0_i32_0 : i32, i32
  }
  func.func @transform_6(%arg0: i32) -> (i32, i32) {
    %c0_i32 = arith.constant 0 : i32
    %c0_i32_0 = arith.constant 0 : i32
    %c0_i32_1 = arith.constant 0 : i32
    return %c0_i32, %c0_i32_0 : i32, i32
  }
  func.func @transform_7(%arg0: i32) -> (i32, i32) {
    %c0_i32 = arith.constant 0 : i32
    %c0_i32_0 = arith.constant 0 : i32
    %c0_i32_1 = arith.constant 0 : i32
    return %c0_i32, %c0_i32_0 : i32, i32
  }
  func.func @transform_8(%arg0: i32) -> (i32, i32, i32) {
    %c0_i32 = arith.constant 0 : i32
    %c0_i32_0 = arith.constant 0 : i32
    %c0_i32_1 = arith.constant 0 : i32
    return %arg0, %c0_i32, %c0_i32_0 : i32, i32, i32
  }
}

module attributes {stable_mosaic.version = 11 : i64} {
  func.func @encoder_layer_kernel(%arg0: i32, %arg1: memref<1x8x32xf32, #tpu.memory_space<vmem>>, %arg2: memref<1x1x8xf32, #tpu.memory_space<vmem>>, %arg3: memref<1x32xf32, #tpu.memory_space<vmem>>, %arg4: memref<1x32xf32, #tpu.memory_space<vmem>>, %arg5: memref<32x96xbf16, #tpu.memory_space<vmem>>, %arg6: memref<1x96xf32, #tpu.memory_space<vmem>>, %arg7: memref<32x32xbf16, #tpu.memory_space<vmem>>, %arg8: memref<1x32xf32, #tpu.memory_space<vmem>>, %arg9: memref<1x8x32xf32, #tpu.memory_space<vmem>>) attributes {dimension_semantics = [#tpu.dimension_semantics<parallel>], iteration_bounds = array<i64: 2>, scalar_prefetch = 0 : i64, scratch_operands = 0 : i64, tpu.core_type = #tpu.core_type<tc>, window_params = [{transform_indices = @transform_0, window_bounds = array<i64: 1, 8, 32>}, {transform_indices = @transform_1, window_bounds = array<i64: 1, 1, 8>}, {pipeline_mode = #tpu.pipeline_mode<synchronous>, transform_indices = @transform_2, window_bounds = array<i64: 1, 32>}, {pipeline_mode = #tpu.pipeline_mode<synchronous>, transform_indices = @transform_3, window_bounds = array<i64: 1, 32>}, {pipeline_mode = #tpu.pipeline_mode<synchronous>, transform_indices = @transform_4, window_bounds = array<i64: 32, 96>}, {pipeline_mode = #tpu.pipeline_mode<synchronous>, transform_indices = @transform_5, window_bounds = array<i64: 1, 96>}, {pipeline_mode = #tpu.pipeline_mode<synchronous>, transform_indices = @transform_6, window_bounds = array<i64: 32, 32>}, {pipeline_mode = #tpu.pipeline_mode<synchronous>, transform_indices = @transform_7, window_bounds = array<i64: 1, 32>}, {transform_indices = @transform_8, window_bounds = array<i64: 1, 8, 32>}]} {
    %c0 = arith.constant 0 : index
    %c0_0 = arith.constant 0 : index
    %c0_1 = arith.constant 0 : index
    %0 = vector.load %arg1[%c0, %c0_0, %c0_1] : memref<1x8x32xf32, #tpu.memory_space<vmem>>, vector<1x8x32xf32>
    %1 = vector.shape_cast %0 : vector<1x8x32xf32> to vector<8x32xf32>
    %c0_2 = arith.constant 0 : index
    %c0_3 = arith.constant 0 : index
    %c0_4 = arith.constant 0 : index
    %2 = vector.load %arg2[%c0_2, %c0_3, %c0_4] : memref<1x1x8xf32, #tpu.memory_space<vmem>>, vector<1x1x8xf32>
    %3 = vector.shape_cast %2 : vector<1x1x8xf32> to vector<1x8xf32>
    %cst = arith.constant 1.000000e+00 : f32
    %4 = vector.broadcast %cst : f32 to vector<1x8xf32>
    %5 = arith.subf %3, %4 : vector<1x8xf32>
    %cst_5 = arith.constant 1.000000e+09 : f32
    %6 = vector.broadcast %cst_5 : f32 to vector<1x8xf32>
    %7 = arith.mulf %5, %6 : vector<1x8xf32>
    %8 = vector.shape_cast %7 : vector<1x8xf32> to vector<1x8xf32>
    %9 = vector.broadcast %8 : vector<1x8xf32> to vector<8x8xf32>
    %c0_6 = arith.constant 0 : index
    %c0_7 = arith.constant 0 : index
    %10 = vector.load %arg3[%c0_6, %c0_7] : memref<1x32xf32, #tpu.memory_space<vmem>>, vector<1x32xf32>
    %c0_8 = arith.constant 0 : index
    %c0_9 = arith.constant 0 : index
    %11 = vector.load %arg4[%c0_8, %c0_9] : memref<1x32xf32, #tpu.memory_space<vmem>>, vector<1x32xf32>
    %cst_10 = arith.constant dense<0.000000e+00> : vector<8xf32>
    %12 = vector.multi_reduction <add>, %1, %cst_10 [1] : vector<8x32xf32> to vector<8xf32>
    %13 = vector.shape_cast %12 : vector<8xf32> to vector<8x1xf32>
    %cst_11 = arith.constant 3.200000e+01 : f32
    %14 = vector.broadcast %cst_11 : f32 to vector<8x1xf32>
    %15 = arith.divf %13, %14 : vector<8x1xf32>
    %16 = vector.broadcast %15 : vector<8x1xf32> to vector<8x32xf32>
    %17 = arith.subf %1, %16 : vector<8x32xf32>
    %18 = arith.mulf %17, %17 : vector<8x32xf32>
    %cst_12 = arith.constant dense<0.000000e+00> : vector<8xf32>
    %19 = vector.multi_reduction <add>, %18, %cst_12 [1] : vector<8x32xf32> to vector<8xf32>
    %20 = vector.shape_cast %19 : vector<8xf32> to vector<8x1xf32>
    %cst_13 = arith.constant 3.200000e+01 : f32
    %21 = vector.broadcast %cst_13 : f32 to vector<8x1xf32>
    %22 = arith.divf %20, %21 : vector<8x1xf32>
    %23 = vector.broadcast %15 : vector<8x1xf32> to vector<8x32xf32>
    %24 = arith.subf %1, %23 : vector<8x32xf32>
    %cst_14 = arith.constant 9.99999997E-7 : f32
    %25 = vector.broadcast %cst_14 : f32 to vector<8x1xf32>
    %26 = arith.addf %22, %25 : vector<8x1xf32>
    %27 = math.rsqrt %26 : vector<8x1xf32>
    %28 = vector.broadcast %27 : vector<8x1xf32> to vector<8x32xf32>
    %29 = arith.mulf %24, %28 : vector<8x32xf32>
    %30 = vector.broadcast %10 : vector<1x32xf32> to vector<8x32xf32>
    %31 = arith.mulf %29, %30 : vector<8x32xf32>
    %32 = vector.broadcast %11 : vector<1x32xf32> to vector<8x32xf32>
    %33 = arith.addf %31, %32 : vector<8x32xf32>
    %34 = arith.truncf %33 : vector<8x32xf32> to vector<8x32xbf16>
    %c0_15 = arith.constant 0 : index
    %c0_16 = arith.constant 0 : index
    %35 = vector.load %arg5[%c0_15, %c0_16] : memref<32x96xbf16, #tpu.memory_space<vmem>>, vector<32x96xbf16>
    %cst_17 = arith.constant dense<0.000000e+00> : vector<8x96xf32>
    %36 = tpu.matmul %34, %35, %cst_17 {dimension_numbers = #tpu.dot_dimension_numbers<[1], [0], [0], [1], [0, 0, 1, 1], [], []>} : vector<8x32xbf16>, vector<32x96xbf16>, vector<8x96xf32> -> vector<8x96xf32>
    %c0_18 = arith.constant 0 : index
    %c0_19 = arith.constant 0 : index
    %37 = vector.load %arg6[%c0_18, %c0_19] : memref<1x96xf32, #tpu.memory_space<vmem>>, vector<1x96xf32>
    %38 = vector.broadcast %37 : vector<1x96xf32> to vector<8x96xf32>
    %39 = arith.addf %36, %38 : vector<8x96xf32>
    %40 = arith.truncf %39 : vector<8x96xf32> to vector<8x96xbf16>
    %41 = vector.extract_strided_slice %40 {offsets = [0, 0], sizes = [8, 32], strides = [1, 1]} : vector<8x96xbf16> to vector<8x32xbf16>
    %42 = vector.extract_strided_slice %40 {offsets = [0, 32], sizes = [8, 32], strides = [1, 1]} : vector<8x96xbf16> to vector<8x32xbf16>
    %43 = vector.extract_strided_slice %40 {offsets = [0, 64], sizes = [8, 32], strides = [1, 1]} : vector<8x96xbf16> to vector<8x32xbf16>
    %44 = vector.extract_strided_slice %41 {offsets = [0, 0], sizes = [8, 8], strides = [1, 1]} : vector<8x32xbf16> to vector<8x8xbf16>
    %45 = vector.extract_strided_slice %42 {offsets = [0, 0], sizes = [8, 8], strides = [1, 1]} : vector<8x32xbf16> to vector<8x8xbf16>
    %cst_20 = arith.constant dense<0.000000e+00> : vector<8x8xf32>
    %46 = tpu.matmul %44, %45, %cst_20 {dimension_numbers = #tpu.dot_dimension_numbers<[1], [1], [0], [0], [0, 0, 1, 0], [], []>} : vector<8x8xbf16>, vector<8x8xbf16>, vector<8x8xf32> -> vector<8x8xf32>
    %47 = arith.addf %46, %9 : vector<8x8xf32>
    %cst_21 = arith.constant dense<0xFF800000> : vector<8xf32>
    %48 = vector.multi_reduction <maximumf>, %47, %cst_21 [1] : vector<8x8xf32> to vector<8xf32>
    %49 = vector.shape_cast %48 : vector<8xf32> to vector<8x1xf32>
    %50 = vector.broadcast %49 : vector<8x1xf32> to vector<8x8xf32>
    %51 = arith.subf %47, %50 : vector<8x8xf32>
    %52 = math.exp %51 : vector<8x8xf32>
    %cst_22 = arith.constant dense<0.000000e+00> : vector<8xf32>
    %53 = vector.multi_reduction <add>, %52, %cst_22 [1] : vector<8x8xf32> to vector<8xf32>
    %54 = vector.shape_cast %53 : vector<8xf32> to vector<8x1xf32>
    %55 = tpu.reciprocal %54 {approx = true} : vector<8x1xf32> -> vector<8x1xf32>
    %56 = vector.broadcast %55 : vector<8x1xf32> to vector<8x8xf32>
    %57 = arith.mulf %52, %56 : vector<8x8xf32>
    %58 = arith.truncf %57 : vector<8x8xf32> to vector<8x8xbf16>
    %59 = vector.extract_strided_slice %43 {offsets = [0, 0], sizes = [8, 8], strides = [1, 1]} : vector<8x32xbf16> to vector<8x8xbf16>
    %cst_23 = arith.constant dense<0.000000e+00> : vector<8x8xf32>
    %60 = tpu.matmul %58, %59, %cst_23 {dimension_numbers = #tpu.dot_dimension_numbers<[1], [0], [0], [1], [0, 0, 1, 1], [], []>} : vector<8x8xbf16>, vector<8x8xbf16>, vector<8x8xf32> -> vector<8x8xf32>
    %61 = vector.extract_strided_slice %41 {offsets = [0, 8], sizes = [8, 8], strides = [1, 1]} : vector<8x32xbf16> to vector<8x8xbf16>
    %62 = vector.extract_strided_slice %42 {offsets = [0, 8], sizes = [8, 8], strides = [1, 1]} : vector<8x32xbf16> to vector<8x8xbf16>
    %cst_24 = arith.constant dense<0.000000e+00> : vector<8x8xf32>
    %63 = tpu.matmul %61, %62, %cst_24 {dimension_numbers = #tpu.dot_dimension_numbers<[1], [1], [0], [0], [0, 0, 1, 0], [], []>} : vector<8x8xbf16>, vector<8x8xbf16>, vector<8x8xf32> -> vector<8x8xf32>
    %64 = arith.addf %63, %9 : vector<8x8xf32>
    %cst_25 = arith.constant dense<0xFF800000> : vector<8xf32>
    %65 = vector.multi_reduction <maximumf>, %64, %cst_25 [1] : vector<8x8xf32> to vector<8xf32>
    %66 = vector.shape_cast %65 : vector<8xf32> to vector<8x1xf32>
    %67 = vector.broadcast %66 : vector<8x1xf32> to vector<8x8xf32>
    %68 = arith.subf %64, %67 : vector<8x8xf32>
    %69 = math.exp %68 : vector<8x8xf32>
    %cst_26 = arith.constant dense<0.000000e+00> : vector<8xf32>
    %70 = vector.multi_reduction <add>, %69, %cst_26 [1] : vector<8x8xf32> to vector<8xf32>
    %71 = vector.shape_cast %70 : vector<8xf32> to vector<8x1xf32>
    %72 = tpu.reciprocal %71 {approx = true} : vector<8x1xf32> -> vector<8x1xf32>
    %73 = vector.broadcast %72 : vector<8x1xf32> to vector<8x8xf32>
    %74 = arith.mulf %69, %73 : vector<8x8xf32>
    %75 = arith.truncf %74 : vector<8x8xf32> to vector<8x8xbf16>
    %76 = vector.extract_strided_slice %43 {offsets = [0, 8], sizes = [8, 8], strides = [1, 1]} : vector<8x32xbf16> to vector<8x8xbf16>
    %cst_27 = arith.constant dense<0.000000e+00> : vector<8x8xf32>
    %77 = tpu.matmul %75, %76, %cst_27 {dimension_numbers = #tpu.dot_dimension_numbers<[1], [0], [0], [1], [0, 0, 1, 1], [], []>} : vector<8x8xbf16>, vector<8x8xbf16>, vector<8x8xf32> -> vector<8x8xf32>
    %78 = vector.extract_strided_slice %41 {offsets = [0, 16], sizes = [8, 8], strides = [1, 1]} : vector<8x32xbf16> to vector<8x8xbf16>
    %79 = vector.extract_strided_slice %42 {offsets = [0, 16], sizes = [8, 8], strides = [1, 1]} : vector<8x32xbf16> to vector<8x8xbf16>
    %cst_28 = arith.constant dense<0.000000e+00> : vector<8x8xf32>
    %80 = tpu.matmul %78, %79, %cst_28 {dimension_numbers = #tpu.dot_dimension_numbers<[1], [1], [0], [0], [0, 0, 1, 0], [], []>} : vector<8x8xbf16>, vector<8x8xbf16>, vector<8x8xf32> -> vector<8x8xf32>
    %81 = arith.addf %80, %9 : vector<8x8xf32>
    %cst_29 = arith.constant dense<0xFF800000> : vector<8xf32>
    %82 = vector.multi_reduction <maximumf>, %81, %cst_29 [1] : vector<8x8xf32> to vector<8xf32>
    %83 = vector.shape_cast %82 : vector<8xf32> to vector<8x1xf32>
    %84 = vector.broadcast %83 : vector<8x1xf32> to vector<8x8xf32>
    %85 = arith.subf %81, %84 : vector<8x8xf32>
    %86 = math.exp %85 : vector<8x8xf32>
    %cst_30 = arith.constant dense<0.000000e+00> : vector<8xf32>
    %87 = vector.multi_reduction <add>, %86, %cst_30 [1] : vector<8x8xf32> to vector<8xf32>
    %88 = vector.shape_cast %87 : vector<8xf32> to vector<8x1xf32>
    %89 = tpu.reciprocal %88 {approx = true} : vector<8x1xf32> -> vector<8x1xf32>
    %90 = vector.broadcast %89 : vector<8x1xf32> to vector<8x8xf32>
    %91 = arith.mulf %86, %90 : vector<8x8xf32>
    %92 = arith.truncf %91 : vector<8x8xf32> to vector<8x8xbf16>
    %93 = vector.extract_strided_slice %43 {offsets = [0, 16], sizes = [8, 8], strides = [1, 1]} : vector<8x32xbf16> to vector<8x8xbf16>
    %cst_31 = arith.constant dense<0.000000e+00> : vector<8x8xf32>
    %94 = tpu.matmul %92, %93, %cst_31 {dimension_numbers = #tpu.dot_dimension_numbers<[1], [0], [0], [1], [0, 0, 1, 1], [], []>} : vector<8x8xbf16>, vector<8x8xbf16>, vector<8x8xf32> -> vector<8x8xf32>
    %95 = vector.extract_strided_slice %41 {offsets = [0, 24], sizes = [8, 8], strides = [1, 1]} : vector<8x32xbf16> to vector<8x8xbf16>
    %96 = vector.extract_strided_slice %42 {offsets = [0, 24], sizes = [8, 8], strides = [1, 1]} : vector<8x32xbf16> to vector<8x8xbf16>
    %cst_32 = arith.constant dense<0.000000e+00> : vector<8x8xf32>
    %97 = tpu.matmul %95, %96, %cst_32 {dimension_numbers = #tpu.dot_dimension_numbers<[1], [1], [0], [0], [0, 0, 1, 0], [], []>} : vector<8x8xbf16>, vector<8x8xbf16>, vector<8x8xf32> -> vector<8x8xf32>
    %98 = arith.addf %97, %9 : vector<8x8xf32>
    %cst_33 = arith.constant dense<0xFF800000> : vector<8xf32>
    %99 = vector.multi_reduction <maximumf>, %98, %cst_33 [1] : vector<8x8xf32> to vector<8xf32>
    %100 = vector.shape_cast %99 : vector<8xf32> to vector<8x1xf32>
    %101 = vector.broadcast %100 : vector<8x1xf32> to vector<8x8xf32>
    %102 = arith.subf %98, %101 : vector<8x8xf32>
    %103 = math.exp %102 : vector<8x8xf32>
    %cst_34 = arith.constant dense<0.000000e+00> : vector<8xf32>
    %104 = vector.multi_reduction <add>, %103, %cst_34 [1] : vector<8x8xf32> to vector<8xf32>
    %105 = vector.shape_cast %104 : vector<8xf32> to vector<8x1xf32>
    %106 = tpu.reciprocal %105 {approx = true} : vector<8x1xf32> -> vector<8x1xf32>
    %107 = vector.broadcast %106 : vector<8x1xf32> to vector<8x8xf32>
    %108 = arith.mulf %103, %107 : vector<8x8xf32>
    %109 = arith.truncf %108 : vector<8x8xf32> to vector<8x8xbf16>
    %110 = vector.extract_strided_slice %43 {offsets = [0, 24], sizes = [8, 8], strides = [1, 1]} : vector<8x32xbf16> to vector<8x8xbf16>
    %cst_35 = arith.constant dense<0.000000e+00> : vector<8x8xf32>
    %111 = tpu.matmul %109, %110, %cst_35 {dimension_numbers = #tpu.dot_dimension_numbers<[1], [0], [0], [1], [0, 0, 1, 1], [], []>} : vector<8x8xbf16>, vector<8x8xbf16>, vector<8x8xf32> -> vector<8x8xf32>
    %112 = tpu.concatenate %60, %77, %94, %111 in 1 : vector<8x8xf32>, vector<8x8xf32>, vector<8x8xf32>, vector<8x8xf32> -> vector<8x32xf32>
    %113 = arith.truncf %112 : vector<8x32xf32> to vector<8x32xbf16>
    %c0_36 = arith.constant 0 : index
    %c0_37 = arith.constant 0 : index
    %114 = vector.load %arg7[%c0_36, %c0_37] : memref<32x32xbf16, #tpu.memory_space<vmem>>, vector<32x32xbf16>
    %cst_38 = arith.constant dense<0.000000e+00> : vector<8x32xf32>
    %115 = tpu.matmul %113, %114, %cst_38 {dimension_numbers = #tpu.dot_dimension_numbers<[1], [0], [0], [1], [0, 0, 1, 1], [], []>} : vector<8x32xbf16>, vector<32x32xbf16>, vector<8x32xf32> -> vector<8x32xf32>
    %c0_39 = arith.constant 0 : index
    %c0_40 = arith.constant 0 : index
    %116 = vector.load %arg8[%c0_39, %c0_40] : memref<1x32xf32, #tpu.memory_space<vmem>>, vector<1x32xf32>
    %117 = vector.broadcast %116 : vector<1x32xf32> to vector<8x32xf32>
    %118 = arith.addf %115, %117 : vector<8x32xf32>
    %119 = arith.addf %1, %118 : vector<8x32xf32>
    %120 = arith.addf %119, %119 : vector<8x32xf32>
    %c0_41 = arith.constant 0 : index
    %c0_42 = arith.constant 0 : index
    %c0_43 = arith.constant 0 : index
    %121 = vector.load %arg9[%c0_41, %c0_42, %c0_43] : memref<1x8x32xf32, #tpu.memory_space<vmem>>, vector<1x8x32xf32>
    %122 = vector.shape_cast %121 : vector<1x8x32xf32> to vector<8x32xf32>
    %123 = vector.shape_cast %120 : vector<8x32xf32> to vector<1x8x32xf32>
    tpu.vector_store %arg9[%c0_41, %c0_42, %c0_43], %123 {strides = array<i32>} : memref<1x8x32xf32, #tpu.memory_space<vmem>>, vector<1x8x32xf32>,
    return
  }
  func.func @transform_0(%arg0: i32) -> (i32, i32, i32) {
    %c0_i32 = arith.constant 0 : i32
    %c0_i32_0 = arith.constant 0 : i32
    %c0_i32_1 = arith.constant 0 : i32
    return %arg0, %c0_i32, %c0_i32_0 : i32, i32, i32
  }
  func.func @transform_1(%arg0: i32) -> (i32, i32, i32) {
    %c0_i32 = arith.constant 0 : i32
    %c0_i32_0 = arith.constant 0 : i32
    %c0_i32_1 = arith.constant 0 : i32
    return %arg0, %c0_i32, %c0_i32_0 : i32, i32, i32
  }
  func.func @transform_2(%arg0: i32) -> (i32, i32) {
    %c0_i32 = arith.constant 0 : i32
    %c0_i32_0 = arith.constant 0 : i32
    %c0_i32_1 = arith.constant 0 : i32
    return %c0_i32, %c0_i32_0 : i32, i32
  }
  func.func @transform_3(%arg0: i32) -> (i32, i32) {
    %c0_i32 = arith.constant 0 : i32
    %c0_i32_0 = arith.constant 0 : i32
    %c0_i32_1 = arith.constant 0 : i32
    return %c0_i32, %c0_i32_0 : i32, i32
  }
  func.func @transform_4(%arg0: i32) -> (i32, i32) {
    %c0_i32 = arith.constant 0 : i32
    %c0_i32_0 = arith.constant 0 : i32
    %c0_i32_1 = arith.constant 0 : i32
    return %c0_i32, %c0_i32_0 : i32, i32
  }
  func.func @transform_5(%arg0: i32) -> (i32, i32) {
    %c0_i32 = arith.constant 0 : i32
    %c0_i32_0 = arith.constant 0 : i32
    %c0_i32_1 = arith.constant 0 : i32
    return %c0_i32, %c0_i32_0 : i32, i32
  }
  func.func @transform_6(%arg0: i32) -> (i32, i32) {
    %c0_i32 = arith.constant 0 : i32
    %c0_i32_0 = arith.constant 0 : i32
    %c0_i32_1 = arith.constant 0 : i32
    return %c0_i32, %c0_i32_0 : i32, i32
  }
  func.func @transform_7(%arg0: i32) -> (i32, i32) {
    %c0_i32 = arith.constant 0 : i32
    %c0_i32_0 = arith.constant 0 : i32
    %c0_i32_1 = arith.constant 0 : i32
    return %c0_i32, %c0_i32_0 : i32, i32
  }
  func.func @transform_8(%arg0: i32) -> (i32, i32, i32) {
    %c0_i32 = arith.constant 0 : i32
    %c0_i32_0 = arith.constant 0 : i32
    %c0_i32_1 = arith.constant 0 : i32
    return %arg0, %c0_i32, %c0_i32_0 : i32, i32, i32
  }
}

</mosaic_0001>

<llo_original>
// kernel: tpu_custom_call.1
$region0: #{tpu_custom_call.1}
  #allocation0 [shape = 'u32[]', space=smem, size = 0x4, offset = 0x4, fixed_abs, tag = 'smem constant byte address 0x4 - core index']
  #allocation1 [shape = 'u32[72,128]{1,0:T(1,128)}', space=vmem, size = 0x9000, scoped, tag = 'internal scratch']
  %s0 = inlined_call_operand.hbm [shape: f32[2,8,32], index: 0, kind: input, shape index: {}]
  %s1 = inlined_call_operand.hbm [shape: f32[2,1,8], index: 1, kind: input, shape index: {}]
  %s2 = inlined_call_operand.vmem [shape: f32[1,32], index: 2, kind: input, shape index: {}]
  %s3 = inlined_call_operand.vmem [shape: f32[1,32], index: 3, kind: input, shape index: {}]
  %s4 = inlined_call_operand.hbm [shape: bf16[32,96], index: 4, kind: input, shape index: {}]
  %s5 = inlined_call_operand.vmem [shape: f32[1,96], index: 5, kind: input, shape index: {}]
  %s6 = inlined_call_operand.hbm [shape: bf16[32,32], index: 6, kind: input, shape index: {}]
  %s7 = inlined_call_operand.vmem [shape: f32[1,32], index: 7, kind: input, shape index: {}]
  %s8 = inlined_call_operand.hbm [shape: f32[2,8,32], index: 8, kind: output, shape index: {}]
  %s9 = sld [smem:[#allocation0]]
  $region81: #{tpu_custom_call.1} parent=0
    _
  %s11 = ssub.s32 1, %s9
  %s12 = scalar_select 0, %s11, %s9
  $region1: #{tpu_custom_call.1} parent=0
    #allocation2 [shape = 'u8[8192]{0}', space=vmem, size = 0x2000, scoped, tag = 'input window, operand 0']
    #allocation3 [shape = 's32[2]{0}', space=sflag, size = 0x8, scoped, tag = 'scoped memory for tpu_custom_call.1']
    #allocation4 [shape = 's32[2]{0}', space=sflag, size = 0x8, scoped, tag = 'scoped memory for tpu_custom_call.1']
    #allocation5 [shape = 'u8[1024]{0}', space=vmem, size = 0x400, scoped, tag = 'input window, operand 1']
    #allocation6 [shape = 's32[2]{0}', space=sflag, size = 0x8, scoped, tag = 'scoped memory for tpu_custom_call.1']
    #allocation7 [shape = 'u8[8192]{0}', space=vmem, size = 0x2000, scoped, tag = 'input window, operand 4, single buffered']
    #allocation8 [shape = 'u8[8192]{0}', space=vmem, size = 0x2000, scoped, tag = 'input window, operand 6, single buffered']
    #allocation9 [shape = 's32[1]{0}', space=sflag, size = 0x4, scoped, tag = 'scoped memory for tpu_custom_call.1']
    #allocation10 [shape = 'u8[8192]{0}', space=vmem, size = 0x2000, scoped, tag = 'output window, operand 0']
    %13 = vsyncpa [#allocation3], 0
    %s14 = scalar_lea.sflag [#allocation3], 1
    %15 = vsyncpa %s14, 0
    %16 = vsyncpa [#allocation6], 0
    %s17 = scalar_lea.sflag [#allocation6], 1
    %18 = vsyncpa %s17, 0
    %19 = vsyncpa [#allocation9], 0
    %20 = vsyncpa [#allocation4], 0
    %s21 = scalar_lea.sflag [#allocation4], 1
    %22 = vsyncpa %s21, 0
    loop: start=0, step=1, limit=4
    $region2: #{tpu_custom_call.1} parent=1 // loop_pre_header
      _
    $region3: #{tpu_custom_call.1} parent=1 // loop_header
      %s24 = sphi 0, %s28
      %p25 = scmp.ge.s32.totalorder %s24, 4
      %s34 = sphi 0, %s36
      %s37 = sphi 0, %s34
      %s38 = sphi 0, %s37
      %s54 = sphi 0, %s38
      %s60 = sphi 0, %s62
      %s63 = sphi 0, %s60
      %s64 = sphi 0, %s63
      %s80 = sphi 0, %s64
      %s84 = sphi 0, %s84
      %s86 = sphi 0, %s84
      %s87 = sphi 0, %s86
      %s101 = sphi 0, %s87
      %s105 = sphi 0, %s105
      %s107 = sphi 0, %s105
      %s108 = sphi 0, %s107
      %s122 = sphi 0, %s108
      %s126 = sphi 0, %s126
      %s128 = sphi 0, %s126
      %s129 = sphi 0, %s128
      %s143 = sphi 0, %s129
      %s147 = sphi 0, %s147
      %s149 = sphi 0, %s147
      %s150 = sphi 0, %s149
      %s164 = sphi 0, %s150
      %s168 = sphi 0, %s168
      %s170 = sphi 0, %s168
      %s171 = sphi 0, %s170
      %s185 = sphi 0, %s171
      %s189 = sphi 0, %s189
      %s191 = sphi 0, %s189
      %s192 = sphi 0, %s191
      %s206 = sphi 0, %s192
      %s212 = sphi 0, %s214
      %s215 = sphi 0, %s212
      %s216 = sphi 0, %s215
      %s232 = sphi 0, %s216
    $region4: #{tpu_custom_call.1} parent=1 // loop_header_branch
      %27 = sbr.rel (%p25) target = $region8
    $region5: #{tpu_custom_call.1} parent=1 // loop_body
      %s29 = ssub.s32 %s24, 1
      %s30 = ssub.s32 %s24, 2
      %s31 = sadd.s32 %s24, 1
      %s32 = ssub.s32 %s24, %s31
      %p33 = scmp.eq.s32.totalorder %s32, 0
      %s35 = sadd.s32 %s34, 1
      %s36 = scalar_select %p33, %s34, %s35
      %p39 = pneg %p33
      %p40 = scmp.eq.s32.totalorder %s24, 1
      %p41 = por %p39, %p40
      %p42 = scmp.ne.s32.totalorder %s34, %s37
      %p43 = scmp.eq.s32.totalorder %s24, 0
      %p44 = por %p42, %p43
      %p45 = scmp.ne.s32.totalorder %s34, %s37
      %p46 = scmp.eq.s32.totalorder %s29, 1
      %p47 = por %p45, %p46
      %p48 = scmp.ne.s32.totalorder %s37, %s38
      %p49 = scmp.eq.s32.totalorder %s29, 0
      %p50 = por %p48, %p49
      %p51 = scmp.ne.s32.totalorder %s37, %s38
      %p52 = scmp.eq.s32.totalorder %s30, 1
      %p53 = por %p51, %p52
      %p55 = scmp.ne.s32.totalorder %s38, %s54
      %p56 = scmp.eq.s32.totalorder %s30, 0
      %p57 = por %p55, %p56
      %s58 = ssub.s32 %s24, %s31
      %p59 = scmp.eq.s32.totalorder %s58, 0
      %s61 = sadd.s32 %s60, 1
      %s62 = scalar_select %p59, %s60, %s61
      %p65 = pneg %p59
      %p66 = scmp.eq.s32.totalorder %s24, 1
      %p67 = por %p65, %p66
      %p68 = scmp.ne.s32.totalorder %s60, %s63
      %p69 = scmp.eq.s32.totalorder %s24, 0
      %p70 = por %p68, %p69
      %p71 = scmp.ne.s32.totalorder %s60, %s63
      %p72 = scmp.eq.s32.totalorder %s29, 1
      %p73 = por %p71, %p72
      %p74 = scmp.ne.s32.totalorder %s63, %s64
      %p75 = scmp.eq.s32.totalorder %s29, 0
      %p76 = por %p74, %p75
      %p77 = scmp.ne.s32.totalorder %s63, %s64
      %p78 = scmp.eq.s32.totalorder %s30, 1
      %p79 = por %p77, %p78
      %p81 = scmp.ne.s32.totalorder %s64, %s80
      %p82 = scmp.eq.s32.totalorder %s30, 0
      %p83 = por %p81, %p82
      %s85 = sadd.s32 %s84, 1
      %p88 = scmp.eq.s32.totalorder %s24, 1
      %p89 = scmp.ne.s32.totalorder %s84, %s86
      %p90 = scmp.eq.s32.totalorder %s24, 0
      %p91 = por %p89, %p90
      %p92 = scmp.ne.s32.totalorder %s84, %s86
      %p93 = scmp.eq.s32.totalorder %s29, 1
      %p94 = por %p92, %p93
      %p95 = scmp.ne.s32.totalorder %s86, %s87
      %p96 = scmp.eq.s32.totalorder %s29, 0
      %p97 = por %p95, %p96
      %p98 = scmp.ne.s32.totalorder %s86, %s87
      %p99 = scmp.eq.s32.totalorder %s30, 1
      %p100 = por %p98, %p99
      %p102 = scmp.ne.s32.totalorder %s87, %s101
      %p103 = scmp.eq.s32.totalorder %s30, 0
      %p104 = por %p102, %p103
      %s106 = sadd.s32 %s105, 1
      %p109 = scmp.eq.s32.totalorder %s24, 1
      %p110 = scmp.ne.s32.totalorder %s105, %s107
      %p111 = scmp.eq.s32.totalorder %s24, 0
      %p112 = por %p110, %p111
      %p113 = scmp.ne.s32.totalorder %s105, %s107
      %p114 = scmp.eq.s32.totalorder %s29, 1
      %p115 = por %p113, %p114
      %p116 = scmp.ne.s32.totalorder %s107, %s108
      %p117 = scmp.eq.s32.totalorder %s29, 0
      %p118 = por %p116, %p117
      %p119 = scmp.ne.s32.totalorder %s107, %s108
      %p120 = scmp.eq.s32.totalorder %s30, 1
      %p121 = por %p119, %p120
      %p123 = scmp.ne.s32.totalorder %s108, %s122
      %p124 = scmp.eq.s32.totalorder %s30, 0
      %p125 = por %p123, %p124
      %s127 = sadd.s32 %s126, 1
      %p130 = scmp.eq.s32.totalorder %s24, 1
      %p131 = scmp.ne.s32.totalorder %s126, %s128
      %p132 = scmp.eq.s32.totalorder %s24, 0
      %p133 = por %p131, %p132
      %p134 = scmp.ne.s32.totalorder %s126, %s128
      %p135 = scmp.eq.s32.totalorder %s29, 1
      %p136 = por %p134, %p135
      %p137 = scmp.ne.s32.totalorder %s128, %s129
      %p138 = scmp.eq.s32.totalorder %s29, 0
      %p139 = por %p137, %p138
      %p140 = scmp.ne.s32.totalorder %s128, %s129
      %p141 = scmp.eq.s32.totalorder %s30, 1
      %p142 = por %p140, %p141
      %p144 = scmp.ne.s32.totalorder %s129, %s143
      %p145 = scmp.eq.s32.totalorder %s30, 0
      %p146 = por %p144, %p145
      %s148 = sadd.s32 %s147, 1
      %p151 = scmp.eq.s32.totalorder %s24, 1
      %p152 = scmp.ne.s32.totalorder %s147, %s149
      %p153 = scmp.eq.s32.totalorder %s24, 0
      %p154 = por %p152, %p153
      %p155 = scmp.ne.s32.totalorder %s147, %s149
      %p156 = scmp.eq.s32.totalorder %s29, 1
      %p157 = por %p155, %p156
      %p158 = scmp.ne.s32.totalorder %s149, %s150
      %p159 = scmp.eq.s32.totalorder %s29, 0
      %p160 = por %p158, %p159
      %p161 = scmp.ne.s32.totalorder %s149, %s150
      %p162 = scmp.eq.s32.totalorder %s30, 1
      %p163 = por %p161, %p162
      %p165 = scmp.ne.s32.totalorder %s150, %s164
      %p166 = scmp.eq.s32.totalorder %s30, 0
      %p167 = por %p165, %p166
      %s169 = sadd.s32 %s168, 1
      %p172 = scmp.eq.s32.totalorder %s24, 1
      %p173 = scmp.ne.s32.totalorder %s168, %s170
      %p174 = scmp.eq.s32.totalorder %s24, 0
      %p175 = por %p173, %p174
      %p176 = scmp.ne.s32.totalorder %s168, %s170
      %p177 = scmp.eq.s32.totalorder %s29, 1
      %p178 = por %p176, %p177
      %p179 = scmp.ne.s32.totalorder %s170, %s171
      %p180 = scmp.eq.s32.totalorder %s29, 0
      %p181 = por %p179, %p180
      %p182 = scmp.ne.s32.totalorder %s170, %s171
      %p183 = scmp.eq.s32.totalorder %s30, 1
      %p184 = por %p182, %p183
      %p186 = scmp.ne.s32.totalorder %s171, %s185
      %p187 = scmp.eq.s32.totalorder %s30, 0
      %p188 = por %p186, %p187
      %s190 = sadd.s32 %s189, 1
      %p193 = scmp.eq.s32.totalorder %s24, 1
      %p194 = scmp.ne.s32.totalorder %s189, %s191
      %p195 = scmp.eq.s32.totalorder %s24, 0
      %p196 = por %p194, %p195
      %p197 = scmp.ne.s32.totalorder %s189, %s191
      %p198 = scmp.eq.s32.totalorder %s29, 1
      %p199 = por %p197, %p198
      %p200 = scmp.ne.s32.totalorder %s191, %s192
      %p201 = scmp.eq.s32.totalorder %s29, 0
      %p202 = por %p200, %p201
      %p203 = scmp.ne.s32.totalorder %s191, %s192
      %p204 = scmp.eq.s32.totalorder %s30, 1
      %p205 = por %p203, %p204
      %p207 = scmp.ne.s32.totalorder %s192, %s206
      %p208 = scmp.eq.s32.totalorder %s30, 0
      %p209 = por %p207, %p208
      %s210 = ssub.s32 %s24, %s31
      %p211 = scmp.eq.s32.totalorder %s210, 0
      %s213 = sadd.s32 %s212, 1
      %s214 = scalar_select %p211, %s212, %s213
      %p217 = pneg %p211
      %p218 = scmp.eq.s32.totalorder %s24, 1
      %p219 = por %p217, %p218
      %p220 = scmp.ne.s32.totalorder %s212, %s215
      %p221 = scmp.eq.s32.totalorder %s24, 0
      %p222 = por %p220, %p221
      %p223 = scmp.ne.s32.totalorder %s212, %s215
      %p224 = scmp.eq.s32.totalorder %s29, 1
      %p225 = por %p223, %p224
      %p226 = scmp.ne.s32.totalorder %s215, %s216
      %p227 = scmp.eq.s32.totalorder %s29, 0
      %p228 = por %p226, %p227
      %p229 = scmp.ne.s32.totalorder %s215, %s216
      %p230 = scmp.eq.s32.totalorder %s30, 1
      %p231 = por %p229, %p230
      %p233 = scmp.ne.s32.totalorder %s216, %s232
      %p234 = scmp.eq.s32.totalorder %s30, 0
      %p235 = por %p233, %p234
      %p236 = scmp.le.s32.totalorder 1, %s24
      %p237 = scmp.lt.s32.totalorder %s24, 3
      %p238 = pnand %p236, %p237
      %p239 = pneg %p238
      // Predicated region
      $region9: #{tpu_custom_call.1} parent=5 // pred_check
        _
      $region10: #{tpu_custom_call.1} parent=5 // pred_check_branch
        %241 = sbr.rel (%p238) target = $region12
      $region11: #{tpu_custom_call.1} parent=5 // pred_region
        %s242 = ssub.s32 %s24, 1
        // Predicated region
        $region13: #{tpu_custom_call.1} parent=11 // pred_check
          %p243 = pneg %p97
        $region14: #{tpu_custom_call.1} parent=11 // pred_check_branch
          %245 = sbr.rel (%p243) target = $region16
        $region15: #{tpu_custom_call.1} parent=11 // pred_region
          _
        $region16: #{tpu_custom_call.1} parent=11 // pred_fallthru
          _
        // Predicated region
        $region17: #{tpu_custom_call.1} parent=11 // pred_check
          %p246 = pneg %p118
        $region18: #{tpu_custom_call.1} parent=11 // pred_check_branch
          %248 = sbr.rel (%p246) target = $region20
        $region19: #{tpu_custom_call.1} parent=11 // pred_region
          _
        $region20: #{tpu_custom_call.1} parent=11 // pred_fallthru
          _
        // Predicated region
        $region21: #{tpu_custom_call.1} parent=11 // pred_check
          %p249 = pneg %p139
        $region22: #{tpu_custom_call.1} parent=11 // pred_check_branch
          %251 = sbr.rel (%p249) target = $region24
        $region23: #{tpu_custom_call.1} parent=11 // pred_region
          %253 = vsyncadd [#allocation6], 0
          %s254 = sshll.u32 %s4, 4
          %s255 = int_to_ptr.hbm [resolvable:$true] %s254
          %s256 = sshll.u32 [#allocation7], 4
          %s257 = int_to_ptr.vmem [resolvable:$true] %s256
          %262 = dma.hbm_to_vmem [thread:$0]  %s255, 256, %s257, [#allocation6], 64, 64, 4
        $region24: #{tpu_custom_call.1} parent=11 // pred_fallthru
          _
        // Predicated region
        $region25: #{tpu_custom_call.1} parent=11 // pred_check
          %p263 = pneg %p160
        $region26: #{tpu_custom_call.1} parent=11 // pred_check_branch
          %265 = sbr.rel (%p263) target = $region28
        $region27: #{tpu_custom_call.1} parent=11 // pred_region
          _
        $region28: #{tpu_custom_call.1} parent=11 // pred_fallthru
          _
        // Predicated region
        $region29: #{tpu_custom_call.1} parent=11 // pred_check
          %p266 = pneg %p181
        $region30: #{tpu_custom_call.1} parent=11 // pred_check_branch
          %268 = sbr.rel (%p266) target = $region32
        $region31: #{tpu_custom_call.1} parent=11 // pred_region
          %270 = vsyncadd [#allocation9], 0
          %s271 = sshll.u32 %s6, 4
          %s272 = int_to_ptr.hbm [resolvable:$true] %s271
          %s273 = sshll.u32 [#allocation8], 4
          %s274 = int_to_ptr.vmem [resolvable:$true] %s273
          %279 = dma.hbm_to_vmem [thread:$0]  %s272, 256, %s274, [#allocation9], 64, 64, 4
        $region32: #{tpu_custom_call.1} parent=11 // pred_fallthru
          _
        // Predicated region
        $region33: #{tpu_custom_call.1} parent=11 // pred_check
          %p280 = pneg %p202
        $region34: #{tpu_custom_call.1} parent=11 // pred_check_branch
          %282 = sbr.rel (%p280) target = $region36
        $region35: #{tpu_custom_call.1} parent=11 // pred_region
          _
        $region36: #{tpu_custom_call.1} parent=11 // pred_fallthru
          _
      $region12: #{tpu_custom_call.1} parent=5 // pred_fallthru
        _
      %p283 = scmp.lt.s32.totalorder %s24, 2
      // Predicated region
      $region37: #{tpu_custom_call.1} parent=5 // pred_check
        %p284 = pneg %p283
      $region38: #{tpu_custom_call.1} parent=5 // pred_check_branch
        %286 = sbr.rel (%p284) target = $region40
      $region39: #{tpu_custom_call.1} parent=5 // pred_region
        // Predicated region
        $region41: #{tpu_custom_call.1} parent=39 // pred_check
          %p287 = pneg %p44
        $region42: #{tpu_custom_call.1} parent=39 // pred_check_branch
          %289 = sbr.rel (%p287) target = $region44
        $region43: #{tpu_custom_call.1} parent=39 // pred_region
          %s290 = sand.u32 %s34, 1
          %s291 = scalar_lea.sflag [#allocation3], %s290
          %s292 = sand.u32 %s34, 1
          %s293 = smul.addr %s292, 8
          %s294 = scalar_lea.vmem [#allocation2], %s293
          %296 = vsyncadd %s291, 0
          %s297 = smul.addr %s24, 8
          %s298 = scalar_lea.hbm %s0, %s297
          %s300 = sshll.u32 %s298, 4
          %s301 = int_to_ptr.hbm [resolvable:$true] %s300
          %s302 = sshll.u32 %s294, 4
          %s303 = int_to_ptr.vmem [resolvable:$true] %s302
          %305 = dma.hbm_to_vmem [thread:$0]  %s301, 128, %s303, %s291
        $region44: #{tpu_custom_call.1} parent=39 // pred_fallthru
          _
        // Predicated region
        $region45: #{tpu_custom_call.1} parent=39 // pred_check
          %p306 = pneg %p70
        $region46: #{tpu_custom_call.1} parent=39 // pred_check_branch
          %308 = sbr.rel (%p306) target = $region48
        $region47: #{tpu_custom_call.1} parent=39 // pred_region
          %s309 = sand.u32 %s24, 1
          %s310 = scalar_lea.sflag [#allocation6], %s309
          %s311 = sand.u32 %s60, 1
          %s312 = scalar_lea.vmem [#allocation5], %s311
          %314 = vsyncadd %s310, 0
          %s315 = scalar_lea.hbm %s1, %s24
          %s317 = sshll.u32 %s315, 4
          %s318 = int_to_ptr.hbm [resolvable:$true] %s317
          %s319 = sshll.u32 %s312, 4
          %s320 = int_to_ptr.vmem [resolvable:$true] %s319
          %322 = dma.hbm_to_vmem [thread:$0]  %s318, 16, %s320, %s310
        $region48: #{tpu_custom_call.1} parent=39 // pred_fallthru
          _
      $region40: #{tpu_custom_call.1} parent=5 // pred_fallthru
        _
      %p323 = scmp.le.s32.totalorder 1, %s24
      %p324 = scmp.lt.s32.totalorder %s24, 3
      %p325 = pnand %p323, %p324
      %p326 = pneg %p325
      // Predicated region
      $region49: #{tpu_custom_call.1} parent=5 // pred_check
        _
      $region50: #{tpu_custom_call.1} parent=5 // pred_check_branch
        %328 = sbr.rel (%p325) target = $region52
      $region51: #{tpu_custom_call.1} parent=5 // pred_region
        %s329 = ssub.s32 %s24, 1
        %s330 = sand.u32 %s37, 1
        %s331 = scalar_lea.sflag [#allocation3], %s330
        %s332 = sand.u32 %s37, 1
        %s333 = smul.addr %s332, 8
        %s334 = scalar_lea.vmem [#allocation2], %s333
        // Predicated region
        $region53: #{tpu_custom_call.1} parent=51 // pred_check
          %p335 = pneg %p50
        $region54: #{tpu_custom_call.1} parent=51 // pred_check_branch
          %337 = sbr.rel (%p335) target = $region56
        $region55: #{tpu_custom_call.1} parent=51 // pred_region
          %339 = dma.done %s331, 128
        $region56: #{tpu_custom_call.1} parent=51 // pred_fallthru
          _
        %s340 = sand.u32 %s29, 1
        %s341 = scalar_lea.sflag [#allocation6], %s340
        %s342 = sand.u32 %s63, 1
        %s343 = scalar_lea.vmem [#allocation5], %s342
        // Predicated region
        $region57: #{tpu_custom_call.1} parent=51 // pred_check
          %p344 = pneg %p76
        $region58: #{tpu_custom_call.1} parent=51 // pred_check_branch
          %346 = sbr.rel (%p344) target = $region60
        $region59: #{tpu_custom_call.1} parent=51 // pred_region
          %348 = dma.done %s341, 16
        $region60: #{tpu_custom_call.1} parent=51 // pred_fallthru
          _
        // Predicated region
        $region61: #{tpu_custom_call.1} parent=51 // pred_check
          %p349 = pneg %p139
        $region62: #{tpu_custom_call.1} parent=51 // pred_check_branch
          %351 = sbr.rel (%p349) target = $region64
        $region63: #{tpu_custom_call.1} parent=51 // pred_region
          %353 = dma.done [#allocation6], 256
        $region64: #{tpu_custom_call.1} parent=51 // pred_fallthru
          _
        // Predicated region
        $region65: #{tpu_custom_call.1} parent=51 // pred_check
          %p354 = pneg %p181
        $region66: #{tpu_custom_call.1} parent=51 // pred_check_branch
          %356 = sbr.rel (%p354) target = $region68
        $region67: #{tpu_custom_call.1} parent=51 // pred_region
          %358 = dma.done [#allocation9], 256
        $region68: #{tpu_custom_call.1} parent=51 // pred_fallthru
          _
        %s359 = sand.u32 %s37, 1
        %s360 = scalar_lea.sflag [#allocation3], %s359
        %s361 = sand.u32 %s37, 1
        %s362 = smul.addr %s361, 8
        %s363 = scalar_lea.vmem [#allocation2], %s362
        %p364 = pneg %p50
        %p365 = pneg %p47
        %s366 = sand.u32 %s29, 1
        %s367 = scalar_lea.sflag [#allocation6], %s366
        %s368 = sand.u32 %s63, 1
        %s369 = scalar_lea.vmem [#allocation5], %s368
        %p370 = pneg %p76
        %p371 = pneg %p73
        %p372 = pneg %p97
        %p373 = pneg %p94
        %p374 = pneg %p118
        %p375 = pneg %p115
        %p376 = pneg %p139
        %p377 = pneg %p136
        %p378 = pneg %p160
        %p379 = pneg %p157
        %p380 = pneg %p181
        %p381 = pneg %p178
        %p382 = pneg %p202
        %p383 = pneg %p199
        %p384 = pneg %p228
        %p385 = pneg %p225
        %s386 = sand.u32 %s215, 1
        %s387 = scalar_lea.sflag [#allocation4], %s386
        %s388 = sand.u32 %s215, 1
        %s389 = smul.addr %s388, 8
        %s390 = scalar_lea.vmem [#allocation10], %s389
        %v392 = vld [vmem:[%s334] sm:$0xff]
        %v393 = vld [vmem:[%s343] sm:$0x1]
        %v394 = vsub.f32 %v393, 1.0
        %v395 = vmul.f32 %v394, 1e+09
        %v397 = vperm.slane %v395, 0
        %v399 = vld [vmem:[%s2] sm:$0x1]
        %v400 = vld [vmem:[%s3] sm:$0x1]
        %vm401 = vcmask 261120
        %v402 = vsel %vm401, %v392, 0.0
        %403 = vadd.xlane.f32.xlu0 %v402
        %v404 = vpop.xlane.xlu0 %403
        %v405 = vrcp.pop 32.0
        %v406 = vmul.f32 32.0, %v405
        %v407 = vsub.f32 1.0, %v406
        %v408 = vmul.f32 %v405, %v407
        %v409 = vadd.f32 %v405, %v408
        %vm410 = vweird.f32 %v405
        %v411 = vsel %vm410, %v405, %v409
        %v412 = vmul.f32 %v404, %v411
        %v413 = vsub.f32 %v392, %v412
        %v414 = vmul.f32 %v413, %v413
        %v415 = vsel %vm401, %v414, 0.0
        %416 = vadd.xlane.f32.xlu0 %v415
        %v417 = vpop.xlane.xlu0 %416
        %v418 = vmul.f32 %v417, %v411
        %v419 = vadd.f32 %v418, 1e-06
        %v420 = vrsqrt.pop %v419
        %v421 = vmul.f32 %v420, %v419
        %v422 = vmul.f32 %v421, %v420
        %v423 = vmul.f32 0.5, %v422
        %v424 = vsub.f32 1.5, %v423
        %v425 = vmul.f32 %v420, %v424
        %vm426 = vweird.f32 %v419
        %vm427 = vweird.f32 %v420
        %vm428 = vmor %vm426, %vm427
        %v429 = vsel %vm428, %v420, %v425
        %v430 = vmul.f32 %v413, %v429
        %v432 = vperm.slane %v399, 0
        %v434 = vmul.f32 %v430, %v432
        %v436 = vperm.slane %v400, 0
        %v438 = vadd.f32 %v434, %v436
        %v439 = vpack.c.bf16 %v438, %v438
        %v440 = vld [vmem:[#allocation7] sm:$0xf]
        %v441 = vld [vmem:[#allocation7 + $0x4] sm:$0xf]
        %v442 = vld [vmem:[#allocation7 + $0x8] sm:$0xf]
        %v443 = vld [vmem:[#allocation7 + $0xc] sm:$0xf]
        %v444 = vld [vmem:[%s5] sm:$0x1]
        %v446 = vperm.slane %v444, 0
        %v452 = vunpack.c.l.b16 %v440
        %v453 = vunpack.c.l.b16 %v441
        %v454 = vunpack.c.l.b16 %v442
        %v455 = vunpack.c.l.b16 %v443
        %v456 = vpack.c.b16 %v453, %v452
        %v457 = vpack.c.b16 %v455, %v454
        %v461 = vsel %vm401, %v439, 0
        %463 = vmatpush.bf16.msra.mxu0 0
        %464 = vmatpush.bf16.msra.mxu0 0
        %465 = vmatpush.bf16.msra.mxu0 0
        %466 = vmatpush.bf16.msra.mxu0 0
        %467 = vmatpush.bf16.msra.mxu0 0
        %468 = vmatpush.bf16.msra.mxu0 0
        %469 = vmatpush.bf16.msra.mxu0 %v457
        %470 = vmatpush.bf16.msra.mxu0 %v456
        %471 = vmatmul.bf16.gmra.mxu0 %v461
        %v472 = vpop.f32.mrf.mxu0
        %v473 = vadd.f32 %v446, %v472
        %v474 = vpop.f32.mrf.mxu0
        %475 = vdwg.mxu0
        %v476 = vpack.c.bf16 %v473, %v473
        %v478 = vunpack.c.l.b16 %v476
        %v479 = vpack.c.b16 %v478, %v478
        %480 = vrot.lane.b32.xlu0 %v479, 96
        %v481 = vpop.permute.xlu0 %480
        %vm482 = vcmask 64512
        %v484 = vsel %vm482, %v476, 0
        %v487 = vsel %vm482, %v481, 0
        %489 = vmatpush.bf16.xpose.msra.mxu0 0
        %490 = vmatpush.bf16.xpose.msra.mxu0 0
        %491 = vmatpush.bf16.xpose.msra.mxu0 0
        %492 = vmatpush.bf16.xpose.msra.mxu0 0
        %493 = vmatpush.bf16.xpose.msra.mxu0 0
        %494 = vmatpush.bf16.xpose.msra.mxu0 0
        %495 = vmatpush.bf16.xpose.msra.mxu0 0
        %496 = vmatpush.bf16.xpose.msra.mxu0 %v487
        %497 = vmatmul.bf16.gmra.mxu0 %v484
        %v498 = vpop.f32.mrf.mxu0
        %v499 = vadd.f32 %v397, %v498
        %v500 = vpop.f32.mrf.mxu0
        %501 = vdwg.mxu0
        %v502 = vsel %vm482, %v499, -inf
        %503 = vmax.xlane.f32.xlu0 %v502
        %v504 = vpop.xlane.xlu0 %503
        %v505 = vsub.f32 %v499, %v504
        %v506 = vmul.f32 %v505, 1.442695
        %v507 = vpow.pop %v506
        %v508 = vsel %vm482, %v507, 0.0
        %509 = vadd.xlane.f32.xlu0 %v508
        %v510 = vpop.xlane.xlu0 %509
        %v511 = vrcp.pop %v510
        %v512 = vmul.f32 %v507, %v511
        %v513 = vpack.c.bf16 %v512, %v512
        %514 = vrot.lane.b32.xlu0 %v479, 64
        %v515 = vpop.permute.xlu0 %514
        %v517 = vsel %vm482, %v513, 0
        %vm519 = vcmask 1043456
        %v521 = vsel %vm519, %v515, 0
        %523 = vmatpush.bf16.msra.mxu0 0
        %524 = vmatpush.bf16.msra.mxu0 0
        %525 = vmatpush.bf16.msra.mxu0 0
        %526 = vmatpush.bf16.msra.mxu0 0
        %527 = vmatpush.bf16.msra.mxu0 0
        %528 = vmatpush.bf16.msra.mxu0 0
        %529 = vmatpush.bf16.msra.mxu0 0
        %530 = vmatpush.bf16.msra.mxu0 %v521
        %531 = vmatmul.bf16.gmra.mxu0 %v517
        %v532 = vpop.f32.mrf.mxu0
        %v533 = vadd.f32 0.0, %v532
        %v534 = vpop.f32.mrf.mxu0
        %535 = vdwg.mxu0
        %536 = vrot.lane.b32.xlu0 %v479, 120
        %v537 = vpop.permute.xlu0 %536
        %538 = vrot.lane.b32.xlu0 %v479, 88
        %v539 = vpop.permute.xlu0 %538
        %v541 = vsel %vm482, %v537, 0
        %v544 = vsel %vm482, %v539, 0
        %546 = vmatpush.bf16.xpose.msra.mxu0 0
        %547 = vmatpush.bf16.xpose.msra.mxu0 0
        %548 = vmatpush.bf16.xpose.msra.mxu0 0
        %549 = vmatpush.bf16.xpose.msra.mxu0 0
        %550 = vmatpush.bf16.xpose.msra.mxu0 0
        %551 = vmatpush.bf16.xpose.msra.mxu0 0
        %552 = vmatpush.bf16.xpose.msra.mxu0 0
        %553 = vmatpush.bf16.xpose.msra.mxu0 %v544
        %554 = vmatmul.bf16.gmra.mxu0 %v541
        %v555 = vpop.f32.mrf.mxu0
        %v556 = vadd.f32 %v397, %v555
        %v557 = vpop.f32.mrf.mxu0
        %558 = vdwg.mxu0
        %v559 = vsel %vm482, %v556, -inf
        %560 = vmax.xlane.f32.xlu0 %v559
        %v561 = vpop.xlane.xlu0 %560
        %v562 = vsub.f32 %v556, %v561
        %v563 = vmul.f32 %v562, 1.442695
        %v564 = vpow.pop %v563
        %v565 = vsel %vm482, %v564, 0.0
        %566 = vadd.xlane.f32.xlu0 %v565
        %v567 = vpop.xlane.xlu0 %566
        %v568 = vrcp.pop %v567
        %v569 = vmul.f32 %v564, %v568
        %v570 = vpack.c.bf16 %v569, %v569
        %571 = vrot.lane.b32.xlu0 %v479, 56
        %v572 = vpop.permute.xlu0 %571
        %v574 = vsel %vm482, %v570, 0
        %v577 = vsel %vm519, %v572, 0
        %579 = vmatpush.bf16.msra.mxu0 0
        %580 = vmatpush.bf16.msra.mxu0 0
        %581 = vmatpush.bf16.msra.mxu0 0
        %582 = vmatpush.bf16.msra.mxu0 0
        %583 = vmatpush.bf16.msra.mxu0 0
        %584 = vmatpush.bf16.msra.mxu0 0
        %585 = vmatpush.bf16.msra.mxu0 0
        %586 = vmatpush.bf16.msra.mxu0 %v577
        %587 = vmatmul.bf16.gmra.mxu0 %v574
        %v588 = vpop.f32.mrf.mxu0
        %v589 = vadd.f32 0.0, %v588
        %v590 = vpop.f32.mrf.mxu0
        %591 = vdwg.mxu0
        %592 = vrot.lane.b32.xlu0 %v479, 112
        %v593 = vpop.permute.xlu0 %592
        %594 = vrot.lane.b32.xlu0 %v479, 80
        %v595 = vpop.permute.xlu0 %594
        %v597 = vsel %vm482, %v593, 0
        %v600 = vsel %vm482, %v595, 0
        %602 = vmatpush.bf16.xpose.msra.mxu0 0
        %603 = vmatpush.bf16.xpose.msra.mxu0 0
        %604 = vmatpush.bf16.xpose.msra.mxu0 0
        %605 = vmatpush.bf16.xpose.msra.mxu0 0
        %606 = vmatpush.bf16.xpose.msra.mxu0 0
        %607 = vmatpush.bf16.xpose.msra.mxu0 0
        %608 = vmatpush.bf16.xpose.msra.mxu0 0
        %609 = vmatpush.bf16.xpose.msra.mxu0 %v600
        %610 = vmatmul.bf16.gmra.mxu0 %v597
        %v611 = vpop.f32.mrf.mxu0
        %v612 = vadd.f32 %v397, %v611
        %v613 = vpop.f32.mrf.mxu0
        %614 = vdwg.mxu0
        %v615 = vsel %vm482, %v612, -inf
        %616 = vmax.xlane.f32.xlu0 %v615
        %v617 = vpop.xlane.xlu0 %616
        %v618 = vsub.f32 %v612, %v617
        %v619 = vmul.f32 %v618, 1.442695
        %v620 = vpow.pop %v619
        %v621 = vsel %vm482, %v620, 0.0
        %622 = vadd.xlane.f32.xlu0 %v621
        %v623 = vpop.xlane.xlu0 %622
        %v624 = vrcp.pop %v623
        %v625 = vmul.f32 %v620, %v624
        %v626 = vpack.c.bf16 %v625, %v625
        %627 = vrot.lane.b32.xlu0 %v479, 48
        %v628 = vpop.permute.xlu0 %627
        %v630 = vsel %vm482, %v626, 0
        %v633 = vsel %vm519, %v628, 0
        %635 = vmatpush.bf16.msra.mxu0 0
        %636 = vmatpush.bf16.msra.mxu0 0
        %637 = vmatpush.bf16.msra.mxu0 0
        %638 = vmatpush.bf16.msra.mxu0 0
        %639 = vmatpush.bf16.msra.mxu0 0
        %640 = vmatpush.bf16.msra.mxu0 0
        %641 = vmatpush.bf16.msra.mxu0 0
        %642 = vmatpush.bf16.msra.mxu0 %v633
        %643 = vmatmul.bf16.gmra.mxu0 %v630
        %v644 = vpop.f32.mrf.mxu0
        %v645 = vadd.f32 0.0, %v644
        %v646 = vpop.f32.mrf.mxu0
        %647 = vdwg.mxu0
        %648 = vrot.lane.b32.xlu0 %v479, 104
        %v649 = vpop.permute.xlu0 %648
        %650 = vrot.lane.b32.xlu0 %v479, 72
        %v651 = vpop.permute.xlu0 %650
        %v653 = vsel %vm482, %v649, 0
        %v656 = vsel %vm482, %v651, 0
        %658 = vmatpush.bf16.xpose.msra.mxu0 0
        %659 = vmatpush.bf16.xpose.msra.mxu0 0
        %660 = vmatpush.bf16.xpose.msra.mxu0 0
        %661 = vmatpush.bf16.xpose.msra.mxu0 0
        %662 = vmatpush.bf16.xpose.msra.mxu0 0
        %663 = vmatpush.bf16.xpose.msra.mxu0 0
        %664 = vmatpush.bf16.xpose.msra.mxu0 0
        %665 = vmatpush.bf16.xpose.msra.mxu0 %v656
        %666 = vmatmul.bf16.gmra.mxu0 %v653
        %v667 = vpop.f32.mrf.mxu0
        %v668 = vadd.f32 %v397, %v667
        %v669 = vpop.f32.mrf.mxu0
        %670 = vdwg.mxu0
        %v671 = vsel %vm482, %v668, -inf
        %672 = vmax.xlane.f32.xlu0 %v671
        %v673 = vpop.xlane.xlu0 %672
        %v674 = vsub.f32 %v668, %v673
        %v675 = vmul.f32 %v674, 1.442695
        %v676 = vpow.pop %v675
        %v677 = vsel %vm482, %v676, 0.0
        %678 = vadd.xlane.f32.xlu0 %v677
        %v679 = vpop.xlane.xlu0 %678
        %v680 = vrcp.pop %v679
        %v681 = vmul.f32 %v676, %v680
        %v682 = vpack.c.bf16 %v681, %v681
        %683 = vrot.lane.b32.xlu0 %v479, 40
        %v684 = vpop.permute.xlu0 %683
        %v686 = vsel %vm482, %v682, 0
        %v689 = vsel %vm519, %v684, 0
        %691 = vmatpush.bf16.msra.mxu0 0
        %692 = vmatpush.bf16.msra.mxu0 0
        %693 = vmatpush.bf16.msra.mxu0 0
        %694 = vmatpush.bf16.msra.mxu0 0
        %695 = vmatpush.bf16.msra.mxu0 0
        %696 = vmatpush.bf16.msra.mxu0 0
        %697 = vmatpush.bf16.msra.mxu0 0
        %698 = vmatpush.bf16.msra.mxu0 %v689
        %699 = vmatmul.bf16.gmra.mxu0 %v686
        %v700 = vpop.f32.mrf.mxu0
        %v701 = vadd.f32 0.0, %v700
        %v702 = vpop.f32.mrf.mxu0
        %703 = vdwg.mxu0
        %705 = vrot.lane.b32.xlu0 %v589, 8
        %v706 = vpop.permute.xlu0 %705
        %709 = vrot.lane.b32.xlu0 %v645, 16
        %v710 = vpop.permute.xlu0 %709
        %713 = vrot.lane.b32.xlu0 %v701, 24
        %v714 = vpop.permute.xlu0 %713
        %v716 = vsel %vm482, %v533, %v706
        %vm717 = vcmask 130048
        %v718 = vsel %vm717, %v716, %v710
        %vm719 = vcmask 195584
        %v720 = vsel %vm719, %v718, %v714
        %v721 = vpack.c.bf16 %v720, %v720
        %v722 = vld [vmem:[#allocation8] sm:$0xf]
        %v723 = vld [vmem:[#allocation8 + $0x4] sm:$0xf]
        %v724 = vld [vmem:[#allocation8 + $0x8] sm:$0xf]
        %v725 = vld [vmem:[#allocation8 + $0xc] sm:$0xf]
        %v726 = vld [vmem:[%s7] sm:$0x1]
        %v728 = vperm.slane %v726, 0
        %v734 = vunpack.c.l.b16 %v722
        %v735 = vunpack.c.l.b16 %v723
        %v736 = vunpack.c.l.b16 %v724
        %v737 = vunpack.c.l.b16 %v725
        %v738 = vpack.c.b16 %v735, %v734
        %v739 = vpack.c.b16 %v737, %v736
        %v743 = vsel %vm401, %v721, 0
        %745 = vmatpush.bf16.msra.mxu0 0
        %746 = vmatpush.bf16.msra.mxu0 0
        %747 = vmatpush.bf16.msra.mxu0 0
        %748 = vmatpush.bf16.msra.mxu0 0
        %749 = vmatpush.bf16.msra.mxu0 0
        %750 = vmatpush.bf16.msra.mxu0 0
        %751 = vmatpush.bf16.msra.mxu0 %v739
        %752 = vmatpush.bf16.msra.mxu0 %v738
        %753 = vmatmul.bf16.gmra.mxu0 %v743
        %v754 = vpop.f32.mrf.mxu0
        %v755 = vadd.f32 %v728, %v754
        %v756 = vpop.f32.mrf.mxu0
        %757 = vdwg.mxu0
        %v758 = vadd.f32 %v392, %v755
        %v759 = vadd.f32 %v758, %v758
        %760 = vst.msk [vmem:[%s390] sm:$0xff] %vm401, %v759
        %s761 = sand.u32 %s215, 1
        %s762 = scalar_lea.sflag [#allocation4], %s761
        %s763 = sand.u32 %s215, 1
        %s764 = smul.addr %s763, 8
        %s765 = scalar_lea.vmem [#allocation10], %s764
        // Predicated region
        $region69: #{tpu_custom_call.1} parent=51 // pred_check
          %p766 = pneg %p225
        $region70: #{tpu_custom_call.1} parent=51 // pred_check_branch
          %768 = sbr.rel (%p766) target = $region72
        $region71: #{tpu_custom_call.1} parent=51 // pred_region
          %770 = vsyncadd %s762, 0
          %s771 = smul.addr %s29, 8
          %s772 = scalar_lea.hbm %s8, %s771
          %s774 = sshll.u32 %s765, 4
          %s775 = int_to_ptr.vmem [resolvable:$true] %s774
          %s776 = sshll.u32 %s772, 4
          %s777 = int_to_ptr.hbm [resolvable:$true] %s776
          %779 = dma.vmem_to_hbm [thread:$0]  %s775, 128, %s777, %s762
        $region72: #{tpu_custom_call.1} parent=51 // pred_fallthru
          _
      $region52: #{tpu_custom_call.1} parent=5 // pred_fallthru
        _
      %p780 = scmp.le.s32.totalorder 2, %s24
      // Predicated region
      $region73: #{tpu_custom_call.1} parent=5 // pred_check
        %p781 = pneg %p780
      $region74: #{tpu_custom_call.1} parent=5 // pred_check_branch
        %783 = sbr.rel (%p781) target = $region76
      $region75: #{tpu_custom_call.1} parent=5 // pred_region
        %s784 = ssub.s32 %s24, 2
        // Predicated region
        $region77: #{tpu_custom_call.1} parent=75 // pred_check
          %p785 = pneg %p231
        $region78: #{tpu_custom_call.1} parent=75 // pred_check_branch
          %787 = sbr.rel (%p785) target = $region80
        $region79: #{tpu_custom_call.1} parent=75 // pred_region
          %s788 = sand.u32 %s216, 1
          %s789 = scalar_lea.sflag [#allocation4], %s788
          %s790 = sand.u32 %s216, 1
          %s791 = smul.addr %s790, 8
          %s792 = scalar_lea.vmem [#allocation10], %s791
          %794 = dma.done %s789, 128
        $region80: #{tpu_custom_call.1} parent=75 // pred_fallthru
          _
      $region76: #{tpu_custom_call.1} parent=5 // pred_fallthru
        _
    $region6: #{tpu_custom_call.1} parent=1 // loop_footer
      %s28 = sadd.s32 1, %s24
    $region7: #{tpu_custom_call.1} parent=1 // loop_footer_branch
      %23 = sbr.rel target = $region3
    $region8: #{tpu_custom_call.1} parent=1 // loop_exit
      _
    %795 = vsyncpa [#allocation3], 1
    %s796 = scalar_lea.sflag [#allocation3], 1
    %797 = vsyncpa %s796, 1
    %798 = vsyncpa [#allocation6], 1
    %s799 = scalar_lea.sflag [#allocation6], 1
    %800 = vsyncpa %s799, 1
    %801 = vsyncpa [#allocation9], 1
    %802 = vsyncpa [#allocation4], 1
    %s803 = scalar_lea.sflag [#allocation4], 1
    %804 = vsyncpa %s803, 1

// kernel: tpu_custom_call.1
$region0: #{tpu_custom_call.1}
  #allocation0 [shape = 'u32[]', space=smem, size = 0x4, offset = 0x4, fixed_abs, tag = 'smem constant byte address 0x4 - core index']
  #allocation1 [shape = 'u32[72,128]{1,0:T(1,128)}', space=vmem, size = 0x9000, scoped, tag = 'internal scratch']
  %s0 = inlined_call_operand.hbm [shape: f32[2,8,32], index: 0, kind: input, shape index: {}]
  %s1 = inlined_call_operand.hbm [shape: f32[2,1,8], index: 1, kind: input, shape index: {}]
  %s2 = inlined_call_operand.vmem [shape: f32[1,32], index: 2, kind: input, shape index: {}]
  %s3 = inlined_call_operand.vmem [shape: f32[1,32], index: 3, kind: input, shape index: {}]
  %s4 = inlined_call_operand.hbm [shape: bf16[32,96], index: 4, kind: input, shape index: {}]
  %s5 = inlined_call_operand.vmem [shape: f32[1,96], index: 5, kind: input, shape index: {}]
  %s6 = inlined_call_operand.hbm [shape: bf16[32,32], index: 6, kind: input, shape index: {}]
  %s7 = inlined_call_operand.vmem [shape: f32[1,32], index: 7, kind: input, shape index: {}]
  %s8 = inlined_call_operand.hbm [shape: f32[2,8,32], index: 8, kind: output, shape index: {}]
  %s9 = sld [smem:[#allocation0]]
  $region81: #{tpu_custom_call.1} parent=0
    _
  %s11 = ssub.s32 1, %s9
  %s12 = scalar_select 0, %s11, %s9
  $region1: #{tpu_custom_call.1} parent=0
    #allocation2 [shape = 'u8[8192]{0}', space=vmem, size = 0x2000, scoped, tag = 'input window, operand 0']
    #allocation3 [shape = 's32[2]{0}', space=sflag, size = 0x8, scoped, tag = 'scoped memory for tpu_custom_call.1']
    #allocation4 [shape = 's32[2]{0}', space=sflag, size = 0x8, scoped, tag = 'scoped memory for tpu_custom_call.1']
    #allocation5 [shape = 'u8[1024]{0}', space=vmem, size = 0x400, scoped, tag = 'input window, operand 1']
    #allocation6 [shape = 's32[2]{0}', space=sflag, size = 0x8, scoped, tag = 'scoped memory for tpu_custom_call.1']
    #allocation7 [shape = 'u8[8192]{0}', space=vmem, size = 0x2000, scoped, tag = 'input window, operand 4, single buffered']
    #allocation8 [shape = 'u8[8192]{0}', space=vmem, size = 0x2000, scoped, tag = 'input window, operand 6, single buffered']
    #allocation9 [shape = 's32[1]{0}', space=sflag, size = 0x4, scoped, tag = 'scoped memory for tpu_custom_call.1']
    #allocation10 [shape = 'u8[8192]{0}', space=vmem, size = 0x2000, scoped, tag = 'output window, operand 0']
    %13 = vsyncpa [#allocation3], 0
    %s14 = scalar_lea.sflag [#allocation3], 1
    %15 = vsyncpa %s14, 0
    %16 = vsyncpa [#allocation6], 0
    %s17 = scalar_lea.sflag [#allocation6], 1
    %18 = vsyncpa %s17, 0
    %19 = vsyncpa [#allocation9], 0
    %20 = vsyncpa [#allocation4], 0
    %s21 = scalar_lea.sflag [#allocation4], 1
    %22 = vsyncpa %s21, 0
    loop: start=0, step=1, limit=4
    $region2: #{tpu_custom_call.1} parent=1 // loop_pre_header
      _
    $region3: #{tpu_custom_call.1} parent=1 // loop_header
      %s24 = sphi 0, %s28
      %p25 = scmp.ge.s32.totalorder %s24, 4
      %s34 = sphi 0, %s36
      %s37 = sphi 0, %s34
      %s38 = sphi 0, %s37
      %s54 = sphi 0, %s38
      %s60 = sphi 0, %s62
      %s63 = sphi 0, %s60
      %s64 = sphi 0, %s63
      %s80 = sphi 0, %s64
      %s84 = sphi 0, %s84
      %s86 = sphi 0, %s84
      %s87 = sphi 0, %s86
      %s101 = sphi 0, %s87
      %s105 = sphi 0, %s105
      %s107 = sphi 0, %s105
      %s108 = sphi 0, %s107
      %s122 = sphi 0, %s108
      %s126 = sphi 0, %s126
      %s128 = sphi 0, %s126
      %s129 = sphi 0, %s128
      %s143 = sphi 0, %s129
      %s147 = sphi 0, %s147
      %s149 = sphi 0, %s147
      %s150 = sphi 0, %s149
      %s164 = sphi 0, %s150
      %s168 = sphi 0, %s168
      %s170 = sphi 0, %s168
      %s171 = sphi 0, %s170
      %s185 = sphi 0, %s171
      %s189 = sphi 0, %s189
      %s191 = sphi 0, %s189
      %s192 = sphi 0, %s191
      %s206 = sphi 0, %s192
      %s212 = sphi 0, %s214
      %s215 = sphi 0, %s212
      %s216 = sphi 0, %s215
      %s232 = sphi 0, %s216
    $region4: #{tpu_custom_call.1} parent=1 // loop_header_branch
      %27 = sbr.rel (%p25) target = $region8
    $region5: #{tpu_custom_call.1} parent=1 // loop_body
      %s29 = ssub.s32 %s24, 1
      %s30 = ssub.s32 %s24, 2
      %s31 = sadd.s32 %s24, 1
      %s32 = ssub.s32 %s24, %s31
      %p33 = scmp.eq.s32.totalorder %s32, 0
      %s35 = sadd.s32 %s34, 1
      %s36 = scalar_select %p33, %s34, %s35
      %p39 = pneg %p33
      %p40 = scmp.eq.s32.totalorder %s24, 1
      %p41 = por %p39, %p40
      %p42 = scmp.ne.s32.totalorder %s34, %s37
      %p43 = scmp.eq.s32.totalorder %s24, 0
      %p44 = por %p42, %p43
      %p45 = scmp.ne.s32.totalorder %s34, %s37
      %p46 = scmp.eq.s32.totalorder %s29, 1
      %p47 = por %p45, %p46
      %p48 = scmp.ne.s32.totalorder %s37, %s38
      %p49 = scmp.eq.s32.totalorder %s29, 0
      %p50 = por %p48, %p49
      %p51 = scmp.ne.s32.totalorder %s37, %s38
      %p52 = scmp.eq.s32.totalorder %s30, 1
      %p53 = por %p51, %p52
      %p55 = scmp.ne.s32.totalorder %s38, %s54
      %p56 = scmp.eq.s32.totalorder %s30, 0
      %p57 = por %p55, %p56
      %s58 = ssub.s32 %s24, %s31
      %p59 = scmp.eq.s32.totalorder %s58, 0
      %s61 = sadd.s32 %s60, 1
      %s62 = scalar_select %p59, %s60, %s61
      %p65 = pneg %p59
      %p66 = scmp.eq.s32.totalorder %s24, 1
      %p67 = por %p65, %p66
      %p68 = scmp.ne.s32.totalorder %s60, %s63
      %p69 = scmp.eq.s32.totalorder %s24, 0
      %p70 = por %p68, %p69
      %p71 = scmp.ne.s32.totalorder %s60, %s63
      %p72 = scmp.eq.s32.totalorder %s29, 1
      %p73 = por %p71, %p72
      %p74 = scmp.ne.s32.totalorder %s63, %s64
      %p75 = scmp.eq.s32.totalorder %s29, 0
      %p76 = por %p74, %p75
      %p77 = scmp.ne.s32.totalorder %s63, %s64
      %p78 = scmp.eq.s32.totalorder %s30, 1
      %p79 = por %p77, %p78
      %p81 = scmp.ne.s32.totalorder %s64, %s80
      %p82 = scmp.eq.s32.totalorder %s30, 0
      %p83 = por %p81, %p82
      %s85 = sadd.s32 %s84, 1
      %p88 = scmp.eq.s32.totalorder %s24, 1
      %p89 = scmp.ne.s32.totalorder %s84, %s86
      %p90 = scmp.eq.s32.totalorder %s24, 0
      %p91 = por %p89, %p90
      %p92 = scmp.ne.s32.totalorder %s84, %s86
      %p93 = scmp.eq.s32.totalorder %s29, 1
      %p94 = por %p92, %p93
      %p95 = scmp.ne.s32.totalorder %s86, %s87
      %p96 = scmp.eq.s32.totalorder %s29, 0
      %p97 = por %p95, %p96
      %p98 = scmp.ne.s32.totalorder %s86, %s87
      %p99 = scmp.eq.s32.totalorder %s30, 1
      %p100 = por %p98, %p99
      %p102 = scmp.ne.s32.totalorder %s87, %s101
      %p103 = scmp.eq.s32.totalorder %s30, 0
      %p104 = por %p102, %p103
      %s106 = sadd.s32 %s105, 1
      %p109 = scmp.eq.s32.totalorder %s24, 1
      %p110 = scmp.ne.s32.totalorder %s105, %s107
      %p111 = scmp.eq.s32.totalorder %s24, 0
      %p112 = por %p110, %p111
      %p113 = scmp.ne.s32.totalorder %s105, %s107
      %p114 = scmp.eq.s32.totalorder %s29, 1
      %p115 = por %p113, %p114
      %p116 = scmp.ne.s32.totalorder %s107, %s108
      %p117 = scmp.eq.s32.totalorder %s29, 0
      %p118 = por %p116, %p117
      %p119 = scmp.ne.s32.totalorder %s107, %s108
      %p120 = scmp.eq.s32.totalorder %s30, 1
      %p121 = por %p119, %p120
      %p123 = scmp.ne.s32.totalorder %s108, %s122
      %p124 = scmp.eq.s32.totalorder %s30, 0
      %p125 = por %p123, %p124
      %s127 = sadd.s32 %s126, 1
      %p130 = scmp.eq.s32.totalorder %s24, 1
      %p131 = scmp.ne.s32.totalorder %s126, %s128
      %p132 = scmp.eq.s32.totalorder %s24, 0
      %p133 = por %p131, %p132
      %p134 = scmp.ne.s32.totalorder %s126, %s128
      %p135 = scmp.eq.s32.totalorder %s29, 1
      %p136 = por %p134, %p135
      %p137 = scmp.ne.s32.totalorder %s128, %s129
      %p138 = scmp.eq.s32.totalorder %s29, 0
      %p139 = por %p137, %p138
      %p140 = scmp.ne.s32.totalorder %s128, %s129
      %p141 = scmp.eq.s32.totalorder %s30, 1
      %p142 = por %p140, %p141
      %p144 = scmp.ne.s32.totalorder %s129, %s143
      %p145 = scmp.eq.s32.totalorder %s30, 0
      %p146 = por %p144, %p145
      %s148 = sadd.s32 %s147, 1
      %p151 = scmp.eq.s32.totalorder %s24, 1
      %p152 = scmp.ne.s32.totalorder %s147, %s149
      %p153 = scmp.eq.s32.totalorder %s24, 0
      %p154 = por %p152, %p153
      %p155 = scmp.ne.s32.totalorder %s147, %s149
      %p156 = scmp.eq.s32.totalorder %s29, 1
      %p157 = por %p155, %p156
      %p158 = scmp.ne.s32.totalorder %s149, %s150
      %p159 = scmp.eq.s32.totalorder %s29, 0
      %p160 = por %p158, %p159
      %p161 = scmp.ne.s32.totalorder %s149, %s150
      %p162 = scmp.eq.s32.totalorder %s30, 1
      %p163 = por %p161, %p162
      %p165 = scmp.ne.s32.totalorder %s150, %s164
      %p166 = scmp.eq.s32.totalorder %s30, 0
      %p167 = por %p165, %p166
      %s169 = sadd.s32 %s168, 1
      %p172 = scmp.eq.s32.totalorder %s24, 1
      %p173 = scmp.ne.s32.totalorder %s168, %s170
      %p174 = scmp.eq.s32.totalorder %s24, 0
      %p175 = por %p173, %p174
      %p176 = scmp.ne.s32.totalorder %s168, %s170
      %p177 = scmp.eq.s32.totalorder %s29, 1
      %p178 = por %p176, %p177
      %p179 = scmp.ne.s32.totalorder %s170, %s171
      %p180 = scmp.eq.s32.totalorder %s29, 0
      %p181 = por %p179, %p180
      %p182 = scmp.ne.s32.totalorder %s170, %s171
      %p183 = scmp.eq.s32.totalorder %s30, 1
      %p184 = por %p182, %p183
      %p186 = scmp.ne.s32.totalorder %s171, %s185
      %p187 = scmp.eq.s32.totalorder %s30, 0
      %p188 = por %p186, %p187
      %s190 = sadd.s32 %s189, 1
      %p193 = scmp.eq.s32.totalorder %s24, 1
      %p194 = scmp.ne.s32.totalorder %s189, %s191
      %p195 = scmp.eq.s32.totalorder %s24, 0
      %p196 = por %p194, %p195
      %p197 = scmp.ne.s32.totalorder %s189, %s191
      %p198 = scmp.eq.s32.totalorder %s29, 1
      %p199 = por %p197, %p198
      %p200 = scmp.ne.s32.totalorder %s191, %s192
      %p201 = scmp.eq.s32.totalorder %s29, 0
      %p202 = por %p200, %p201
      %p203 = scmp.ne.s32.totalorder %s191, %s192
      %p204 = scmp.eq.s32.totalorder %s30, 1
      %p205 = por %p203, %p204
      %p207 = scmp.ne.s32.totalorder %s192, %s206
      %p208 = scmp.eq.s32.totalorder %s30, 0
      %p209 = por %p207, %p208
      %s210 = ssub.s32 %s24, %s31
      %p211 = scmp.eq.s32.totalorder %s210, 0
      %s213 = sadd.s32 %s212, 1
      %s214 = scalar_select %p211, %s212, %s213
      %p217 = pneg %p211
      %p218 = scmp.eq.s32.totalorder %s24, 1
      %p219 = por %p217, %p218
      %p220 = scmp.ne.s32.totalorder %s212, %s215
      %p221 = scmp.eq.s32.totalorder %s24, 0
      %p222 = por %p220, %p221
      %p223 = scmp.ne.s32.totalorder %s212, %s215
      %p224 = scmp.eq.s32.totalorder %s29, 1
      %p225 = por %p223, %p224
      %p226 = scmp.ne.s32.totalorder %s215, %s216
      %p227 = scmp.eq.s32.totalorder %s29, 0
      %p228 = por %p226, %p227
      %p229 = scmp.ne.s32.totalorder %s215, %s216
      %p230 = scmp.eq.s32.totalorder %s30, 1
      %p231 = por %p229, %p230
      %p233 = scmp.ne.s32.totalorder %s216, %s232
      %p234 = scmp.eq.s32.totalorder %s30, 0
      %p235 = por %p233, %p234
      %p236 = scmp.le.s32.totalorder 1, %s24
      %p237 = scmp.lt.s32.totalorder %s24, 3
      %p238 = pnand %p236, %p237
      %p239 = pneg %p238
      // Predicated region
      $region9: #{tpu_custom_call.1} parent=5 // pred_check
        _
      $region10: #{tpu_custom_call.1} parent=5 // pred_check_branch
        %241 = sbr.rel (%p238) target = $region12
      $region11: #{tpu_custom_call.1} parent=5 // pred_region
        %s242 = ssub.s32 %s24, 1
        // Predicated region
        $region13: #{tpu_custom_call.1} parent=11 // pred_check
          %p243 = pneg %p97
        $region14: #{tpu_custom_call.1} parent=11 // pred_check_branch
          %245 = sbr.rel (%p243) target = $region16
        $region15: #{tpu_custom_call.1} parent=11 // pred_region
          _
        $region16: #{tpu_custom_call.1} parent=11 // pred_fallthru
          _
        // Predicated region
        $region17: #{tpu_custom_call.1} parent=11 // pred_check
          %p246 = pneg %p118
        $region18: #{tpu_custom_call.1} parent=11 // pred_check_branch
          %248 = sbr.rel (%p246) target = $region20
        $region19: #{tpu_custom_call.1} parent=11 // pred_region
          _
        $region20: #{tpu_custom_call.1} parent=11 // pred_fallthru
          _
        // Predicated region
        $region21: #{tpu_custom_call.1} parent=11 // pred_check
          %p249 = pneg %p139
        $region22: #{tpu_custom_call.1} parent=11 // pred_check_branch
          %251 = sbr.rel (%p249) target = $region24
        $region23: #{tpu_custom_call.1} parent=11 // pred_region
          %253 = vsyncadd [#allocation6], 0
          %s254 = sshll.u32 %s4, 4
          %s255 = int_to_ptr.hbm [resolvable:$true] %s254
          %s256 = sshll.u32 [#allocation7], 4
          %s257 = int_to_ptr.vmem [resolvable:$true] %s256
          %262 = dma.hbm_to_vmem [thread:$0]  %s255, 256, %s257, [#allocation6], 64, 64, 4
        $region24: #{tpu_custom_call.1} parent=11 // pred_fallthru
          _
        // Predicated region
        $region25: #{tpu_custom_call.1} parent=11 // pred_check
          %p263 = pneg %p160
        $region26: #{tpu_custom_call.1} parent=11 // pred_check_branch
          %265 = sbr.rel (%p263) target = $region28
        $region27: #{tpu_custom_call.1} parent=11 // pred_region
          _
        $region28: #{tpu_custom_call.1} parent=11 // pred_fallthru
          _
        // Predicated region
        $region29: #{tpu_custom_call.1} parent=11 // pred_check
          %p266 = pneg %p181
        $region30: #{tpu_custom_call.1} parent=11 // pred_check_branch
          %268 = sbr.rel (%p266) target = $region32
        $region31: #{tpu_custom_call.1} parent=11 // pred_region
          %270 = vsyncadd [#allocation9], 0
          %s271 = sshll.u32 %s6, 4
          %s272 = int_to_ptr.hbm [resolvable:$true] %s271
          %s273 = sshll.u32 [#allocation8], 4
          %s274 = int_to_ptr.vmem [resolvable:$true] %s273
          %279 = dma.hbm_to_vmem [thread:$0]  %s272, 256, %s274, [#allocation9], 64, 64, 4
        $region32: #{tpu_custom_call.1} parent=11 // pred_fallthru
          _
        // Predicated region
        $region33: #{tpu_custom_call.1} parent=11 // pred_check
          %p280 = pneg %p202
        $region34: #{tpu_custom_call.1} parent=11 // pred_check_branch
          %282 = sbr.rel (%p280) target = $region36
        $region35: #{tpu_custom_call.1} parent=11 // pred_region
          _
        $region36: #{tpu_custom_call.1} parent=11 // pred_fallthru
          _
      $region12: #{tpu_custom_call.1} parent=5 // pred_fallthru
        _
      %p283 = scmp.lt.s32.totalorder %s24, 2
      // Predicated region
      $region37: #{tpu_custom_call.1} parent=5 // pred_check
        %p284 = pneg %p283
      $region38: #{tpu_custom_call.1} parent=5 // pred_check_branch
        %286 = sbr.rel (%p284) target = $region40
      $region39: #{tpu_custom_call.1} parent=5 // pred_region
        // Predicated region
        $region41: #{tpu_custom_call.1} parent=39 // pred_check
          %p287 = pneg %p44
        $region42: #{tpu_custom_call.1} parent=39 // pred_check_branch
          %289 = sbr.rel (%p287) target = $region44
        $region43: #{tpu_custom_call.1} parent=39 // pred_region
          %s290 = sand.u32 %s34, 1
          %s291 = scalar_lea.sflag [#allocation3], %s290
          %s292 = sand.u32 %s34, 1
          %s293 = smul.addr %s292, 8
          %s294 = scalar_lea.vmem [#allocation2], %s293
          %296 = vsyncadd %s291, 0
          %s297 = smul.addr %s24, 8
          %s298 = scalar_lea.hbm %s0, %s297
          %s300 = sshll.u32 %s298, 4
          %s301 = int_to_ptr.hbm [resolvable:$true] %s300
          %s302 = sshll.u32 %s294, 4
          %s303 = int_to_ptr.vmem [resolvable:$true] %s302
          %305 = dma.hbm_to_vmem [thread:$0]  %s301, 128, %s303, %s291
        $region44: #{tpu_custom_call.1} parent=39 // pred_fallthru
          _
        // Predicated region
        $region45: #{tpu_custom_call.1} parent=39 // pred_check
          %p306 = pneg %p70
        $region46: #{tpu_custom_call.1} parent=39 // pred_check_branch
          %308 = sbr.rel (%p306) target = $region48
        $region47: #{tpu_custom_call.1} parent=39 // pred_region
          %s309 = sand.u32 %s24, 1
          %s310 = scalar_lea.sflag [#allocation6], %s309
          %s311 = sand.u32 %s60, 1
          %s312 = scalar_lea.vmem [#allocation5], %s311
          %314 = vsyncadd %s310, 0
          %s315 = scalar_lea.hbm %s1, %s24
          %s317 = sshll.u32 %s315, 4
          %s318 = int_to_ptr.hbm [resolvable:$true] %s317
          %s319 = sshll.u32 %s312, 4
          %s320 = int_to_ptr.vmem [resolvable:$true] %s319
          %322 = dma.hbm_to_vmem [thread:$0]  %s318, 16, %s320, %s310
        $region48: #{tpu_custom_call.1} parent=39 // pred_fallthru
          _
      $region40: #{tpu_custom_call.1} parent=5 // pred_fallthru
        _
      %p323 = scmp.le.s32.totalorder 1, %s24
      %p324 = scmp.lt.s32.totalorder %s24, 3
      %p325 = pnand %p323, %p324
      %p326 = pneg %p325
      // Predicated region
      $region49: #{tpu_custom_call.1} parent=5 // pred_check
        _
      $region50: #{tpu_custom_call.1} parent=5 // pred_check_branch
        %328 = sbr.rel (%p325) target = $region52
      $region51: #{tpu_custom_call.1} parent=5 // pred_region
        %s329 = ssub.s32 %s24, 1
        %s330 = sand.u32 %s37, 1
        %s331 = scalar_lea.sflag [#allocation3], %s330
        %s332 = sand.u32 %s37, 1
        %s333 = smul.addr %s332, 8
        %s334 = scalar_lea.vmem [#allocation2], %s333
        // Predicated region
        $region53: #{tpu_custom_call.1} parent=51 // pred_check
          %p335 = pneg %p50
        $region54: #{tpu_custom_call.1} parent=51 // pred_check_branch
          %337 = sbr.rel (%p335) target = $region56
        $region55: #{tpu_custom_call.1} parent=51 // pred_region
          %339 = dma.done %s331, 128
        $region56: #{tpu_custom_call.1} parent=51 // pred_fallthru
          _
        %s340 = sand.u32 %s29, 1
        %s341 = scalar_lea.sflag [#allocation6], %s340
        %s342 = sand.u32 %s63, 1
        %s343 = scalar_lea.vmem [#allocation5], %s342
        // Predicated region
        $region57: #{tpu_custom_call.1} parent=51 // pred_check
          %p344 = pneg %p76
        $region58: #{tpu_custom_call.1} parent=51 // pred_check_branch
          %346 = sbr.rel (%p344) target = $region60
        $region59: #{tpu_custom_call.1} parent=51 // pred_region
          %348 = dma.done %s341, 16
        $region60: #{tpu_custom_call.1} parent=51 // pred_fallthru
          _
        // Predicated region
        $region61: #{tpu_custom_call.1} parent=51 // pred_check
          %p349 = pneg %p139
        $region62: #{tpu_custom_call.1} parent=51 // pred_check_branch
          %351 = sbr.rel (%p349) target = $region64
        $region63: #{tpu_custom_call.1} parent=51 // pred_region
          %353 = dma.done [#allocation6], 256
        $region64: #{tpu_custom_call.1} parent=51 // pred_fallthru
          _
        // Predicated region
        $region65: #{tpu_custom_call.1} parent=51 // pred_check
          %p354 = pneg %p181
        $region66: #{tpu_custom_call.1} parent=51 // pred_check_branch
          %356 = sbr.rel (%p354) target = $region68
        $region67: #{tpu_custom_call.1} parent=51 // pred_region
          %358 = dma.done [#allocation9], 256
        $region68: #{tpu_custom_call.1} parent=51 // pred_fallthru
          _
        %s359 = sand.u32 %s37, 1
        %s360 = scalar_lea.sflag [#allocation3], %s359
        %s361 = sand.u32 %s37, 1
        %s362 = smul.addr %s361, 8
        %s363 = scalar_lea.vmem [#allocation2], %s362
        %p364 = pneg %p50
        %p365 = pneg %p47
        %s366 = sand.u32 %s29, 1
        %s367 = scalar_lea.sflag [#allocation6], %s366
        %s368 = sand.u32 %s63, 1
        %s369 = scalar_lea.vmem [#allocation5], %s368
        %p370 = pneg %p76
        %p371 = pneg %p73
        %p372 = pneg %p97
        %p373 = pneg %p94
        %p374 = pneg %p118
        %p375 = pneg %p115
        %p376 = pneg %p139
        %p377 = pneg %p136
        %p378 = pneg %p160
        %p379 = pneg %p157
        %p380 = pneg %p181
        %p381 = pneg %p178
        %p382 = pneg %p202
        %p383 = pneg %p199
        %p384 = pneg %p228
        %p385 = pneg %p225
        %s386 = sand.u32 %s215, 1
        %s387 = scalar_lea.sflag [#allocation4], %s386
        %s388 = sand.u32 %s215, 1
        %s389 = smul.addr %s388, 8
        %s390 = scalar_lea.vmem [#allocation10], %s389
        %v392 = vld [vmem:[%s334] sm:$0xff]
        %v393 = vld [vmem:[%s343] sm:$0x1]
        %v394 = vsub.f32 %v393, 1.0
        %v395 = vmul.f32 %v394, 1e+09
        %v397 = vperm.slane %v395, 0
        %v399 = vld [vmem:[%s2] sm:$0x1]
        %v400 = vld [vmem:[%s3] sm:$0x1]
        %vm401 = vcmask 261120
        %v402 = vsel %vm401, %v392, 0.0
        %403 = vadd.xlane.f32.xlu0 %v402
        %v404 = vpop.xlane.xlu0 %403
        %v405 = vrcp.pop 32.0
        %v406 = vmul.f32 32.0, %v405
        %v407 = vsub.f32 1.0, %v406
        %v408 = vmul.f32 %v405, %v407
        %v409 = vadd.f32 %v405, %v408
        %vm410 = vweird.f32 %v405
        %v411 = vsel %vm410, %v405, %v409
        %v412 = vmul.f32 %v404, %v411
        %v413 = vsub.f32 %v392, %v412
        %v414 = vmul.f32 %v413, %v413
        %v415 = vsel %vm401, %v414, 0.0
        %416 = vadd.xlane.f32.xlu0 %v415
        %v417 = vpop.xlane.xlu0 %416
        %v418 = vmul.f32 %v417, %v411
        %v419 = vadd.f32 %v418, 1e-06
        %v420 = vrsqrt.pop %v419
        %v421 = vmul.f32 %v420, %v419
        %v422 = vmul.f32 %v421, %v420
        %v423 = vmul.f32 0.5, %v422
        %v424 = vsub.f32 1.5, %v423
        %v425 = vmul.f32 %v420, %v424
        %vm426 = vweird.f32 %v419
        %vm427 = vweird.f32 %v420
        %vm428 = vmor %vm426, %vm427
        %v429 = vsel %vm428, %v420, %v425
        %v430 = vmul.f32 %v413, %v429
        %v432 = vperm.slane %v399, 0
        %v434 = vmul.f32 %v430, %v432
        %v436 = vperm.slane %v400, 0
        %v438 = vadd.f32 %v434, %v436
        %v439 = vpack.c.bf16 %v438, %v438
        %v440 = vld [vmem:[#allocation7] sm:$0xf]
        %v441 = vld [vmem:[#allocation7 + $0x4] sm:$0xf]
        %v442 = vld [vmem:[#allocation7 + $0x8] sm:$0xf]
        %v443 = vld [vmem:[#allocation7 + $0xc] sm:$0xf]
        %v444 = vld [vmem:[%s5] sm:$0x1]
        %v446 = vperm.slane %v444, 0
        %v452 = vunpack.c.l.b16 %v440
        %v453 = vunpack.c.l.b16 %v441
        %v454 = vunpack.c.l.b16 %v442
        %v455 = vunpack.c.l.b16 %v443
        %v456 = vpack.c.b16 %v453, %v452
        %v457 = vpack.c.b16 %v455, %v454
        %v461 = vsel %vm401, %v439, 0
        %463 = vmatpush.bf16.msra.mxu0 0
        %464 = vmatpush.bf16.msra.mxu0 0
        %465 = vmatpush.bf16.msra.mxu0 0
        %466 = vmatpush.bf16.msra.mxu0 0
        %467 = vmatpush.bf16.msra.mxu0 0
        %468 = vmatpush.bf16.msra.mxu0 0
        %469 = vmatpush.bf16.msra.mxu0 %v457
        %470 = vmatpush.bf16.msra.mxu0 %v456
        %471 = vmatmul.bf16.gmra.mxu0 %v461
        %v472 = vpop.f32.mrf.mxu0
        %v473 = vadd.f32 %v446, %v472
        %v474 = vpop.f32.mrf.mxu0
        %475 = vdwg.mxu0
        %v476 = vpack.c.bf16 %v473, %v473
        %v478 = vunpack.c.l.b16 %v476
        %v479 = vpack.c.b16 %v478, %v478
        %480 = vrot.lane.b32.xlu0 %v479, 96
        %v481 = vpop.permute.xlu0 %480
        %vm482 = vcmask 64512
        %v484 = vsel %vm482, %v476, 0
        %v487 = vsel %vm482, %v481, 0
        %489 = vmatpush.bf16.xpose.msra.mxu0 0
        %490 = vmatpush.bf16.xpose.msra.mxu0 0
        %491 = vmatpush.bf16.xpose.msra.mxu0 0
        %492 = vmatpush.bf16.xpose.msra.mxu0 0
        %493 = vmatpush.bf16.xpose.msra.mxu0 0
        %494 = vmatpush.bf16.xpose.msra.mxu0 0
        %495 = vmatpush.bf16.xpose.msra.mxu0 0
        %496 = vmatpush.bf16.xpose.msra.mxu0 %v487
        %497 = vmatmul.bf16.gmra.mxu0 %v484
        %v498 = vpop.f32.mrf.mxu0
        %v499 = vadd.f32 %v397, %v498
        %v500 = vpop.f32.mrf.mxu0
        %501 = vdwg.mxu0
        %v502 = vsel %vm482, %v499, -inf
        %503 = vmax.xlane.f32.xlu0 %v502
        %v504 = vpop.xlane.xlu0 %503
        %v505 = vsub.f32 %v499, %v504
        %v506 = vmul.f32 %v505, 1.442695
        %v507 = vpow.pop %v506
        %v508 = vsel %vm482, %v507, 0.0
        %509 = vadd.xlane.f32.xlu0 %v508
        %v510 = vpop.xlane.xlu0 %509
        %v511 = vrcp.pop %v510
        %v512 = vmul.f32 %v507, %v511
        %v513 = vpack.c.bf16 %v512, %v512
        %514 = vrot.lane.b32.xlu0 %v479, 64
        %v515 = vpop.permute.xlu0 %514
        %v517 = vsel %vm482, %v513, 0
        %vm519 = vcmask 1043456
        %v521 = vsel %vm519, %v515, 0
        %523 = vmatpush.bf16.msra.mxu0 0
        %524 = vmatpush.bf16.msra.mxu0 0
        %525 = vmatpush.bf16.msra.mxu0 0
        %526 = vmatpush.bf16.msra.mxu0 0
        %527 = vmatpush.bf16.msra.mxu0 0
        %528 = vmatpush.bf16.msra.mxu0 0
        %529 = vmatpush.bf16.msra.mxu0 0
        %530 = vmatpush.bf16.msra.mxu0 %v521
        %531 = vmatmul.bf16.gmra.mxu0 %v517
        %v532 = vpop.f32.mrf.mxu0
        %v533 = vadd.f32 0.0, %v532
        %v534 = vpop.f32.mrf.mxu0
        %535 = vdwg.mxu0
        %536 = vrot.lane.b32.xlu0 %v479, 120
        %v537 = vpop.permute.xlu0 %536
        %538 = vrot.lane.b32.xlu0 %v479, 88
        %v539 = vpop.permute.xlu0 %538
        %v541 = vsel %vm482, %v537, 0
        %v544 = vsel %vm482, %v539, 0
        %546 = vmatpush.bf16.xpose.msra.mxu0 0
        %547 = vmatpush.bf16.xpose.msra.mxu0 0
        %548 = vmatpush.bf16.xpose.msra.mxu0 0
        %549 = vmatpush.bf16.xpose.msra.mxu0 0
        %550 = vmatpush.bf16.xpose.msra.mxu0 0
        %551 = vmatpush.bf16.xpose.msra.mxu0 0
        %552 = vmatpush.bf16.xpose.msra.mxu0 0
        %553 = vmatpush.bf16.xpose.msra.mxu0 %v544
        %554 = vmatmul.bf16.gmra.mxu0 %v541
        %v555 = vpop.f32.mrf.mxu0
        %v556 = vadd.f32 %v397, %v555
        %v557 = vpop.f32.mrf.mxu0
        %558 = vdwg.mxu0
        %v559 = vsel %vm482, %v556, -inf
        %560 = vmax.xlane.f32.xlu0 %v559
        %v561 = vpop.xlane.xlu0 %560
        %v562 = vsub.f32 %v556, %v561
        %v563 = vmul.f32 %v562, 1.442695
        %v564 = vpow.pop %v563
        %v565 = vsel %vm482, %v564, 0.0
        %566 = vadd.xlane.f32.xlu0 %v565
        %v567 = vpop.xlane.xlu0 %566
        %v568 = vrcp.pop %v567
        %v569 = vmul.f32 %v564, %v568
        %v570 = vpack.c.bf16 %v569, %v569
        %571 = vrot.lane.b32.xlu0 %v479, 56
        %v572 = vpop.permute.xlu0 %571
        %v574 = vsel %vm482, %v570, 0
        %v577 = vsel %vm519, %v572, 0
        %579 = vmatpush.bf16.msra.mxu0 0
        %580 = vmatpush.bf16.msra.mxu0 0
        %581 = vmatpush.bf16.msra.mxu0 0
        %582 = vmatpush.bf16.msra.mxu0 0
        %583 = vmatpush.bf16.msra.mxu0 0
        %584 = vmatpush.bf16.msra.mxu0 0
        %585 = vmatpush.bf16.msra.mxu0 0
        %586 = vmatpush.bf16.msra.mxu0 %v577
        %587 = vmatmul.bf16.gmra.mxu0 %v574
        %v588 = vpop.f32.mrf.mxu0
        %v589 = vadd.f32 0.0, %v588
        %v590 = vpop.f32.mrf.mxu0
        %591 = vdwg.mxu0
        %592 = vrot.lane.b32.xlu0 %v479, 112
        %v593 = vpop.permute.xlu0 %592
        %594 = vrot.lane.b32.xlu0 %v479, 80
        %v595 = vpop.permute.xlu0 %594
        %v597 = vsel %vm482, %v593, 0
        %v600 = vsel %vm482, %v595, 0
        %602 = vmatpush.bf16.xpose.msra.mxu0 0
        %603 = vmatpush.bf16.xpose.msra.mxu0 0
        %604 = vmatpush.bf16.xpose.msra.mxu0 0
        %605 = vmatpush.bf16.xpose.msra.mxu0 0
        %606 = vmatpush.bf16.xpose.msra.mxu0 0
        %607 = vmatpush.bf16.xpose.msra.mxu0 0
        %608 = vmatpush.bf16.xpose.msra.mxu0 0
        %609 = vmatpush.bf16.xpose.msra.mxu0 %v600
        %610 = vmatmul.bf16.gmra.mxu0 %v597
        %v611 = vpop.f32.mrf.mxu0
        %v612 = vadd.f32 %v397, %v611
        %v613 = vpop.f32.mrf.mxu0
        %614 = vdwg.mxu0
        %v615 = vsel %vm482, %v612, -inf
        %616 = vmax.xlane.f32.xlu0 %v615
        %v617 = vpop.xlane.xlu0 %616
        %v618 = vsub.f32 %v612, %v617
        %v619 = vmul.f32 %v618, 1.442695
        %v620 = vpow.pop %v619
        %v621 = vsel %vm482, %v620, 0.0
        %622 = vadd.xlane.f32.xlu0 %v621
        %v623 = vpop.xlane.xlu0 %622
        %v624 = vrcp.pop %v623
        %v625 = vmul.f32 %v620, %v624
        %v626 = vpack.c.bf16 %v625, %v625
        %627 = vrot.lane.b32.xlu0 %v479, 48
        %v628 = vpop.permute.xlu0 %627
        %v630 = vsel %vm482, %v626, 0
        %v633 = vsel %vm519, %v628, 0
        %635 = vmatpush.bf16.msra.mxu0 0
        %636 = vmatpush.bf16.msra.mxu0 0
        %637 = vmatpush.bf16.msra.mxu0 0
        %638 = vmatpush.bf16.msra.mxu0 0
        %639 = vmatpush.bf16.msra.mxu0 0
        %640 = vmatpush.bf16.msra.mxu0 0
        %641 = vmatpush.bf16.msra.mxu0 0
        %642 = vmatpush.bf16.msra.mxu0 %v633
        %643 = vmatmul.bf16.gmra.mxu0 %v630
        %v644 = vpop.f32.mrf.mxu0
        %v645 = vadd.f32 0.0, %v644
        %v646 = vpop.f32.mrf.mxu0
        %647 = vdwg.mxu0
        %648 = vrot.lane.b32.xlu0 %v479, 104
        %v649 = vpop.permute.xlu0 %648
        %650 = vrot.lane.b32.xlu0 %v479, 72
        %v651 = vpop.permute.xlu0 %650
        %v653 = vsel %vm482, %v649, 0
        %v656 = vsel %vm482, %v651, 0
        %658 = vmatpush.bf16.xpose.msra.mxu0 0
        %659 = vmatpush.bf16.xpose.msra.mxu0 0
        %660 = vmatpush.bf16.xpose.msra.mxu0 0
        %661 = vmatpush.bf16.xpose.msra.mxu0 0
        %662 = vmatpush.bf16.xpose.msra.mxu0 0
        %663 = vmatpush.bf16.xpose.msra.mxu0 0
        %664 = vmatpush.bf16.xpose.msra.mxu0 0
        %665 = vmatpush.bf16.xpose.msra.mxu0 %v656
        %666 = vmatmul.bf16.gmra.mxu0 %v653
        %v667 = vpop.f32.mrf.mxu0
        %v668 = vadd.f32 %v397, %v667
        %v669 = vpop.f32.mrf.mxu0
        %670 = vdwg.mxu0
        %v671 = vsel %vm482, %v668, -inf
        %672 = vmax.xlane.f32.xlu0 %v671
        %v673 = vpop.xlane.xlu0 %672
        %v674 = vsub.f32 %v668, %v673
        %v675 = vmul.f32 %v674, 1.442695
        %v676 = vpow.pop %v675
        %v677 = vsel %vm482, %v676, 0.0
        %678 = vadd.xlane.f32.xlu0 %v677
        %v679 = vpop.xlane.xlu0 %678
        %v680 = vrcp.pop %v679
        %v681 = vmul.f32 %v676, %v680
        %v682 = vpack.c.bf16 %v681, %v681
        %683 = vrot.lane.b32.xlu0 %v479, 40
        %v684 = vpop.permute.xlu0 %683
        %v686 = vsel %vm482, %v682, 0
        %v689 = vsel %vm519, %v684, 0
        %691 = vmatpush.bf16.msra.mxu0 0
        %692 = vmatpush.bf16.msra.mxu0 0
        %693 = vmatpush.bf16.msra.mxu0 0
        %694 = vmatpush.bf16.msra.mxu0 0
        %695 = vmatpush.bf16.msra.mxu0 0
        %696 = vmatpush.bf16.msra.mxu0 0
        %697 = vmatpush.bf16.msra.mxu0 0
        %698 = vmatpush.bf16.msra.mxu0 %v689
        %699 = vmatmul.bf16.gmra.mxu0 %v686
        %v700 = vpop.f32.mrf.mxu0
        %v701 = vadd.f32 0.0, %v700
        %v702 = vpop.f32.mrf.mxu0
        %703 = vdwg.mxu0
        %705 = vrot.lane.b32.xlu0 %v589, 8
        %v706 = vpop.permute.xlu0 %705
        %709 = vrot.lane.b32.xlu0 %v645, 16
        %v710 = vpop.permute.xlu0 %709
        %713 = vrot.lane.b32.xlu0 %v701, 24
        %v714 = vpop.permute.xlu0 %713
        %v716 = vsel %vm482, %v533, %v706
        %vm717 = vcmask 130048
        %v718 = vsel %vm717, %v716, %v710
        %vm719 = vcmask 195584
        %v720 = vsel %vm719, %v718, %v714
        %v721 = vpack.c.bf16 %v720, %v720
        %v722 = vld [vmem:[#allocation8] sm:$0xf]
        %v723 = vld [vmem:[#allocation8 + $0x4] sm:$0xf]
        %v724 = vld [vmem:[#allocation8 + $0x8] sm:$0xf]
        %v725 = vld [vmem:[#allocation8 + $0xc] sm:$0xf]
        %v726 = vld [vmem:[%s7] sm:$0x1]
        %v728 = vperm.slane %v726, 0
        %v734 = vunpack.c.l.b16 %v722
        %v735 = vunpack.c.l.b16 %v723
        %v736 = vunpack.c.l.b16 %v724
        %v737 = vunpack.c.l.b16 %v725
        %v738 = vpack.c.b16 %v735, %v734
        %v739 = vpack.c.b16 %v737, %v736
        %v743 = vsel %vm401, %v721, 0
        %745 = vmatpush.bf16.msra.mxu0 0
        %746 = vmatpush.bf16.msra.mxu0 0
        %747 = vmatpush.bf16.msra.mxu0 0
        %748 = vmatpush.bf16.msra.mxu0 0
        %749 = vmatpush.bf16.msra.mxu0 0
        %750 = vmatpush.bf16.msra.mxu0 0
        %751 = vmatpush.bf16.msra.mxu0 %v739
        %752 = vmatpush.bf16.msra.mxu0 %v738
        %753 = vmatmul.bf16.gmra.mxu0 %v743
        %v754 = vpop.f32.mrf.mxu0
        %v755 = vadd.f32 %v728, %v754
        %v756 = vpop.f32.mrf.mxu0
        %757 = vdwg.mxu0
        %v758 = vadd.f32 %v392, %v755
        %v759 = vadd.f32 %v758, %v758
        %760 = vst.msk [vmem:[%s390] sm:$0xff] %vm401, %v759
        %s761 = sand.u32 %s215, 1
        %s762 = scalar_lea.sflag [#allocation4], %s761
        %s763 = sand.u32 %s215, 1
        %s764 = smul.addr %s763, 8
        %s765 = scalar_lea.vmem [#allocation10], %s764
        // Predicated region
        $region69: #{tpu_custom_call.1} parent=51 // pred_check
          %p766 = pneg %p225
        $region70: #{tpu_custom_call.1} parent=51 // pred_check_branch
          %768 = sbr.rel (%p766) target = $region72
        $region71: #{tpu_custom_call.1} parent=51 // pred_region
          %770 = vsyncadd %s762, 0
          %s771 = smul.addr %s29, 8
          %s772 = scalar_lea.hbm %s8, %s771
          %s774 = sshll.u32 %s765, 4
          %s775 = int_to_ptr.vmem [resolvable:$true] %s774
          %s776 = sshll.u32 %s772, 4
          %s777 = int_to_ptr.hbm [resolvable:$true] %s776
          %779 = dma.vmem_to_hbm [thread:$0]  %s775, 128, %s777, %s762
        $region72: #{tpu_custom_call.1} parent=51 // pred_fallthru
          _
      $region52: #{tpu_custom_call.1} parent=5 // pred_fallthru
        _
      %p780 = scmp.le.s32.totalorder 2, %s24
      // Predicated region
      $region73: #{tpu_custom_call.1} parent=5 // pred_check
        %p781 = pneg %p780
      $region74: #{tpu_custom_call.1} parent=5 // pred_check_branch
        %783 = sbr.rel (%p781) target = $region76
      $region75: #{tpu_custom_call.1} parent=5 // pred_region
        %s784 = ssub.s32 %s24, 2
        // Predicated region
        $region77: #{tpu_custom_call.1} parent=75 // pred_check
          %p785 = pneg %p231
        $region78: #{tpu_custom_call.1} parent=75 // pred_check_branch
          %787 = sbr.rel (%p785) target = $region80
        $region79: #{tpu_custom_call.1} parent=75 // pred_region
          %s788 = sand.u32 %s216, 1
          %s789 = scalar_lea.sflag [#allocation4], %s788
          %s790 = sand.u32 %s216, 1
          %s791 = smul.addr %s790, 8
          %s792 = scalar_lea.vmem [#allocation10], %s791
          %794 = dma.done %s789, 128
        $region80: #{tpu_custom_call.1} parent=75 // pred_fallthru
          _
      $region76: #{tpu_custom_call.1} parent=5 // pred_fallthru
        _
    $region6: #{tpu_custom_call.1} parent=1 // loop_footer
      %s28 = sadd.s32 1, %s24
    $region7: #{tpu_custom_call.1} parent=1 // loop_footer_branch
      %23 = sbr.rel target = $region3
    $region8: #{tpu_custom_call.1} parent=1 // loop_exit
      _
    %795 = vsyncpa [#allocation3], 1
    %s796 = scalar_lea.sflag [#allocation3], 1
    %797 = vsyncpa %s796, 1
    %798 = vsyncpa [#allocation6], 1
    %s799 = scalar_lea.sflag [#allocation6], 1
    %800 = vsyncpa %s799, 1
    %801 = vsyncpa [#allocation9], 1
    %802 = vsyncpa [#allocation4], 1
    %s803 = scalar_lea.sflag [#allocation4], 1
    %804 = vsyncpa %s803, 1

</llo_original>
